<compile_context>
chip_gen: v5e
topology: v5e:2x2
jax: 0.10.0
libtpu: 0.0.40
codegen_flags: <defaults>
</compile_context>

<pallas_src>
import functools

import jax
import jax.numpy as jnp
from jax import lax
from jax.experimental import pallas as pl
from jax.experimental.pallas import tpu as pltpu


def _conv3x3_same_w(v_halo, w_ref, n_out, W, C, Cout):
    """3x3 conv, zero-padded in W, 'valid' in H: 3-tap dx concat + 3 dy matmuls.

    v_halo: (n_out + 2, W, C) in the MXU compute dtype; dy halo rows already
            included (and already zeroed where they fall outside the image).
    w_ref:  Ref (3, 3*C, Cout), dy-major / dx-minor / channel packing
            (slab dy+1, row (dx+1)*C + c  holds  w_oihw[co, c, dy+1, dx+1]).
    Returns f32 (n_out * W, Cout).
    """
    R = n_out + 2
    zcol = jnp.zeros((R, 1, C), v_halo.dtype)
    col_dx = jnp.concatenate(
        [jnp.concatenate([zcol, v_halo[:, :-1]], axis=1),   # dx = -1
         v_halo,                                            # dx =  0
         jnp.concatenate([v_halo[:, 1:], zcol], axis=1)],   # dx = +1
        axis=-1).reshape(R * W, 3 * C)
    # dy = dyi - 1: output row y reads col_dx rows (y + dyi) * W + x.
    acc = jnp.dot(col_dx[0:n_out * W, :], w_ref[0],
                  preferred_element_type=jnp.float32)
    acc = acc + jnp.dot(col_dx[W:W + n_out * W, :], w_ref[1],
                        preferred_element_type=jnp.float32)
    acc = acc + jnp.dot(col_dx[2 * W:2 * W + n_out * W, :], w_ref[2],
                        preferred_element_type=jnp.float32)
    return acc


def _avgpool2x2_stride2(x):
    """2x2 average pool, stride 2, on an (H, W, C) value."""
    H, W, C = x.shape
    xw = x.reshape(H, W // 2, 2, C)
    xw = xw[:, :, 0, :] + xw[:, :, 1, :]          # (H, W//2, C)
    xh = xw.reshape(H // 2, 2, W // 2, C)
    xh = xh[:, 0, :, :] + xh[:, 1, :, :]          # (H//2, W//2, C)
    return xh * 0.25


def _resblock_kernel(x_ref, w1_ref, b1_ref, w2_ref, b2_ref, wb_ref, bb_ref,
                     out_ref, *, H, W, Cin, Cout, tile_h, stride, has_bypass,
                     compute_dtype):
    f32 = jnp.float32
    i = pl.program_id(1)
    row0 = pl.multiple_of(i * tile_h, tile_h)     # first (pre-pool) output row

    # x window: image rows [row0-2, row0+tile_h+2), i.e. rows
    # [row0, row0+tile_h+4) of the wrapper-padded (2 zero rows top/bot) x.
    xw = x_ref[0, pl.ds(row0, tile_h + 4), :, :]            # (tile_h+4, W, Cin) f32

    # ---- conv1 + bias + ReLU: tile_h+2 halo rows of h1 (seam rows recomputed) ----
    h1 = _conv3x3_same_w(xw.astype(compute_dtype), w1_ref,
                         tile_h + 2, W, Cin, Cout)          # f32 ((tile_h+2)*W, Cout)
    h1 = jnp.maximum(h1 + b1_ref[...], 0.0)
    # Zero halo rows outside the image: they are conv2's zero padding, NOT
    # conv1 evaluated beyond the boundary.
    flat = lax.broadcasted_iota(jnp.int32, ((tile_h + 2) * W, 1), 0)
    lo = jnp.maximum(1 - row0, 0) * W
    hi = jnp.minimum(tile_h + 2, H - row0 + 1) * W
    h1 = jnp.where((flat >= lo) & (flat < hi), h1, 0.0)

    # ---- conv2 + bias: tile_h output rows ----
    h1c = h1.reshape(tile_h + 2, W, Cout).astype(compute_dtype)
    h2 = _conv3x3_same_w(h1c, w2_ref, tile_h, W, Cout, Cout) + b2_ref[...]

    # ---- bypass: 1x1 conv (Cin != Cout) or exact-f32 identity ----
    xc = xw[2:2 + tile_h]                                    # (tile_h, W, Cin) f32
    if has_bypass:
        hb = (jnp.dot(xc.reshape(tile_h * W, Cin).astype(compute_dtype),
                      wb_ref[...], preferred_element_type=f32) + bb_ref[...])
    else:
        hb = xc.reshape(tile_h * W, Cin)                     # Cin == Cout

    # AvgPool2d is linear: pool(h2) + pool(hb) == pool(h2 + hb) -> one pool.
    s = (h2 + hb).reshape(tile_h, W, Cout)
    if stride != 1:
        s = _avgpool2x2_stride2(s)
    out_ref[0] = s.astype(out_ref.dtype)


def _pick_tile_h(H, W, Cout, stride, compute_dtype, budget_bytes=6 << 20):
    """Largest divisor of H (even when pooling) whose conv2 working set fits."""
    cbytes = jnp.dtype(compute_dtype).itemsize
    divs = [t for t in range(1, H + 1)
            if H % t == 0 and (stride == 1 or t % 2 == 0)]
    assert divs, "H must have an even divisor when stride != 1"

    def footprint(t):
        rows = t + 2
        col2 = rows * W * 3 * Cout * cbytes            # conv2 dx-concat
        h1 = rows * W * Cout * (4 + cbytes)            # f32 acc + compute copy
        eplg = 3 * t * W * Cout * 4                    # h2 / bypass / sum (f32)
        return col2 + h1 + eplg

    fitting = [t for t in divs if footprint(t) <= budget_bytes]
    return max(fitting) if fitting else min(divs)


def _vmem_limit_bytes(H, W, Cin, Cout, tile_h, stride, compute_dtype):
    cbytes = jnp.dtype(compute_dtype).itemsize
    r1, r2 = tile_h + 4, tile_h + 2
    est = 0
    est += 2 * (H + 4) * W * Cin * 4                                  # x block (2 bufs)
    est += 2 * (tile_h // stride) * (W // stride) * Cout * 4          # out block (2 bufs)
    est += 2 * (9 * Cin + 9 * Cout + Cin + 3) * Cout * 4              # weights + biases
    est += r1 * W * Cin * (4 + cbytes) + r1 * W * 3 * Cin * cbytes    # xw + col1
    est += r2 * W * Cout * (4 + cbytes) + r2 * W * 3 * Cout * cbytes  # h1 + col2
    est += 3 * tile_h * W * Cout * 4                                  # h2/bypass/sum
    est = 2 * est + (8 << 20)                                         # Mosaic headroom
    return int(min(max(est, 32 << 20), 100 << 20))


def first_resblock_discriminator(x_nchw, params, *, stride=1,
                                 compute_dtype=jnp.bfloat16, tile_h=None):
    """x_nchw: (N, Cin, H, W) float32 — same convention as the PyTorch module."""
    N, Cin, H, W = x_nchw.shape
    Cout = params["w1"].shape[0]
    has_bypass = Cin != Cout

    if stride == 1:
        Ho, Wo = H, W
    else:
        # TODO(synk): AvgPool2d(2, stride not in {1, 2}) is not implemented.
        assert stride == 2 and H % 2 == 0 and W % 2 == 0
        Ho, Wo = H // 2, W // 2
    assert W % 8 == 0, "W must be a multiple of 8 (prefer 16 when bf16)"

    if tile_h is None:
        tile_h = _pick_tile_h(H, W, Cout, stride, compute_dtype)
    assert H % tile_h == 0
    assert stride == 1 or tile_h % 2 == 0
    n_tiles = H // tile_h
    tile_ho = tile_h // stride

    # NCHW -> NHWC, plus a 2-row zero halo on H so every row tile's conv1
    # window is in-bounds.  x stays f32 so the identity bypass is bit-exact.
    x = jnp.transpose(x_nchw, (0, 2, 3, 1)).astype(jnp.float32)
    x = jnp.pad(x, ((0, 0), (2, 2), (0, 0), (0, 0)))

    # Pack 3x3 weights as (3 dy-slabs, 3*C, Cout): each conv is three
    # accumulating K=3*C matmuls over one dx-concat im2col buffer.
    # (Cheap; hoist out of the per-call path when calling in a tight loop.)
    def pack3x3(w, C):
        return (jnp.transpose(w, (2, 3, 1, 0))
                .reshape(3, 3 * C, Cout).astype(compute_dtype))

    w1p = pack3x3(params["w1"], Cin)
    w2p = pack3x3(params["w2"], Cout)
    b1 = params["b1"].reshape(1, Cout).astype(jnp.float32)
    b2 = params["b2"].reshape(1, Cout).astype(jnp.float32)
    if has_bypass:
        wb = jnp.transpose(params["wb"][:, :, 0, 0], (1, 0)).astype(compute_dtype)
        bb = params["bb"].reshape(1, Cout).astype(jnp.float32)
    else:
        wb = jnp.zeros((Cin, Cout), compute_dtype)   # unused
        bb = jnp.zeros((1, Cout), jnp.float32)       # unused

    kernel = functools.partial(
        _resblock_kernel, H=H, W=W, Cin=Cin, Cout=Cout, tile_h=tile_h,
        stride=stride, has_bypass=has_bypass, compute_dtype=compute_dtype)

    out_nhwc = pl.pallas_call(
        kernel,
        out_shape=jax.ShapeDtypeStruct((N, Ho, Wo, Cout), jnp.float32),
        grid_spec=pltpu.PrefetchScalarGridSpec(
            num_scalar_prefetch=0,
            grid=(N, n_tiles),
            in_specs=[
                pl.BlockSpec((1, H + 4, W, Cin), lambda n, i: (n, 0, 0, 0)),
                pl.BlockSpec((3, 3 * Cin, Cout), lambda n, i: (0, 0, 0)),
                pl.BlockSpec((1, Cout), lambda n, i: (0, 0)),
                pl.BlockSpec((3, 3 * Cout, Cout), lambda n, i: (0, 0, 0)),
                pl.BlockSpec((1, Cout), lambda n, i: (0, 0)),
                pl.BlockSpec((Cin, Cout), lambda n, i: (0, 0)),
                pl.BlockSpec((1, Cout), lambda n, i: (0, 0)),
            ],
            out_specs=pl.BlockSpec((1, tile_ho, Wo, Cout),
                                   lambda n, i: (n, i, 0, 0)),
        ),
        compiler_params=pltpu.CompilerParams(
            dimension_semantics=("parallel", "parallel"),
            vmem_limit_bytes=_vmem_limit_bytes(H, W, Cin, Cout, tile_h, stride,
                                               compute_dtype)),
    )(x, w1p, b1, w2p, b2, wb, bb)

    return jnp.transpose(out_nhwc, (0, 3, 1, 2))              # NHWC -> NCHW


# --------------------- pure-JAX reference (for verification) ---------------------
def _ref_forward(x_nchw, params, *, stride=1):
    Cout = params["w1"].shape[0]
    Cin = x_nchw.shape[1]
    has_bypass = Cin != Cout

    def conv(x, w, b, pad):
        y = lax.conv_general_dilated(
            x, w, (1, 1), [(pad, pad), (pad, pad)],
            dimension_numbers=("NCHW", "OIHW", "NCHW"))
        return y + b[None, :, None, None]

    h = conv(x_nchw, params["w1"], params["b1"], 1)
    h = jnp.maximum(h, 0.0)
    h = conv(h, params["w2"], params["b2"], 1)
    xb = conv(x_nchw, params["wb"], params["bb"], 0) if has_bypass else x_nchw

    if stride != 1:
        def pool(z):
            return lax.reduce_window(z, 0.0, lax.add, (1, 1, 2, 2),
                                     (1, 1, stride, stride), "VALID") / 4.0
        h, xb = pool(h), pool(xb)
    return h + xb


if __name__ == "__main__":
    key = jax.random.PRNGKey(0)

    # ---- config 1: in_ch != out_ch (1x1-conv bypass) + AvgPool2d(2, 2) ----
    N, Cin, Cout, H, W = 2, 4, 8, 16, 16
    ks = jax.random.split(key, 7)
    params = {
        "w1": 0.1 * jax.random.normal(ks[0], (Cout, Cin, 3, 3), jnp.float32),
        "b1": 0.1 * jax.random.normal(ks[1], (Cout,), jnp.float32),
        "w2": 0.1 * jax.random.normal(ks[2], (Cout, Cout, 3, 3), jnp.float32),
        "b2": 0.1 * jax.random.normal(ks[3], (Cout,), jnp.float32),
        "wb": 0.1 * jax.random.normal(ks[4], (Cout, Cin, 1, 1), jnp.float32),
        "bb": 0.1 * jax.random.normal(ks[5], (Cout,), jnp.float32),
    }
    x = jax.random.normal(ks[6], (N, Cin, H, W), jnp.float32)
    ref = _ref_forward(x, params, stride=2)

    # f32 MXU path, forced 2 row tiles (exercises halo / boundary masking).
    out_f32 = jax.block_until_ready(first_resblock_discriminator(
        x, params, stride=2, compute_dtype=jnp.float32, tile_h=8))
    assert out_f32.shape == ref.shape == (N, Cout, H // 2, W // 2)
    assert jnp.allclose(out_f32, ref, atol=1e-3, rtol=1e-3), (
        float(jnp.max(jnp.abs(out_f32 - ref))))

    # Default path: bf16 MXU operands, auto tile_h, f32 accumulation/epilogue.
    out_bf16 = jax.block_until_ready(
        first_resblock_discriminator(x, params, stride=2))
    assert jnp.allclose(out_bf16, ref, atol=5e-2, rtol=5e-2), (
        float(jnp.max(jnp.abs(out_bf16 - ref))))

    # ---- config 2: in_ch == out_ch (identity bypass), stride=1, 4 row tiles ----
    ks2 = jax.random.split(jax.random.PRNGKey(1), 5)
    C2 = 8
    params2 = {
        "w1": 0.1 * jax.random.normal(ks2[0], (C2, C2, 3, 3), jnp.float32),
        "b1": 0.1 * jax.random.normal(ks2[1], (C2,), jnp.float32),
        "w2": 0.1 * jax.random.normal(ks2[2], (C2, C2, 3, 3), jnp.float32),
        "b2": 0.1 * jax.random.normal(ks2[3], (C2,), jnp.float32),
    }
    x2 = jax.random.normal(ks2[4], (N, C2, H, W), jnp.float32)
    ref2 = _ref_forward(x2, params2, stride=1)
    out2 = jax.block_until_ready(first_resblock_discriminator(
        x2, params2, stride=1, compute_dtype=jnp.float32, tile_h=4))
    assert out2.shape == ref2.shape == (N, C2, H, W)
    assert jnp.allclose(out2, ref2, atol=1e-3, rtol=1e-3), (
        float(jnp.max(jnp.abs(out2 - ref2))))

    print("KERNEL_OK")
</pallas_src>

<mosaic_0001>
module attributes {stable_mosaic.version = 11 : i64} {
  func.func @_resblock_kernel(%arg0: i32, %arg1: i32, %arg2: memref<1x20x16x4xf32, #tpu.memory_space<vmem>>, %arg3: memref<3x12x8xf32, #tpu.memory_space<vmem>>, %arg4: memref<1x8xf32, #tpu.memory_space<vmem>>, %arg5: memref<3x24x8xf32, #tpu.memory_space<vmem>>, %arg6: memref<1x8xf32, #tpu.memory_space<vmem>>, %arg7: memref<4x8xf32, #tpu.memory_space<vmem>>, %arg8: memref<1x8xf32, #tpu.memory_space<vmem>>, %arg9: memref<1x4x8x8xf32, #tpu.memory_space<vmem>>) attributes {dimension_semantics = [#tpu.dimension_semantics<parallel>, #tpu.dimension_semantics<parallel>], iteration_bounds = array<i64: 2, 2>, scalar_prefetch = 0 : i64, scratch_operands = 0 : i64, tpu.core_type = #tpu.core_type<tc>, window_params = [{transform_indices = @transform_0, window_bounds = array<i64: 1, 20, 16, 4>}, {pipeline_mode = #tpu.pipeline_mode<synchronous>, transform_indices = @transform_1, window_bounds = array<i64: 3, 12, 8>}, {pipeline_mode = #tpu.pipeline_mode<synchronous>, transform_indices = @transform_2, window_bounds = array<i64: 1, 8>}, {pipeline_mode = #tpu.pipeline_mode<synchronous>, transform_indices = @transform_3, window_bounds = array<i64: 3, 24, 8>}, {pipeline_mode = #tpu.pipeline_mode<synchronous>, transform_indices = @transform_4, window_bounds = array<i64: 1, 8>}, {pipeline_mode = #tpu.pipeline_mode<synchronous>, transform_indices = @transform_5, window_bounds = array<i64: 4, 8>}, {pipeline_mode = #tpu.pipeline_mode<synchronous>, transform_indices = @transform_6, window_bounds = array<i64: 1, 8>}, {transform_indices = @transform_7, window_bounds = array<i64: 1, 4, 8, 8>}]} {
    %c8_i32 = arith.constant 8 : i32
    %0 = arith.muli %arg1, %c8_i32 : i32
    %1 = tpu.assume_multiple %0, 8 : i32
    %c0 = arith.constant 0 : index
    %2 = arith.index_cast %1 : i32 to index
    %c0_0 = arith.constant 0 : index
    %c0_1 = arith.constant 0 : index
    %3 = vector.load %arg2[%c0, %2, %c0_0, %c0_1] : memref<1x20x16x4xf32, #tpu.memory_space<vmem>>, vector<1x12x16x4xf32>
    %4 = vector.shape_cast %3 : vector<1x12x16x4xf32> to vector<12x16x4xf32>
    %cst = arith.constant 0.000000e+00 : f32
    %5 = vector.broadcast %cst : f32 to vector<12x1x4xf32>
    %6 = vector.extract_strided_slice %4 {offsets = [0, 0, 0], sizes = [12, 15, 4], strides = [1, 1, 1]} : vector<12x16x4xf32> to vector<12x15x4xf32>
    %7 = tpu.concatenate %5, %6 in 1 : vector<12x1x4xf32>, vector<12x15x4xf32> -> vector<12x16x4xf32>
    %8 = vector.extract_strided_slice %4 {offsets = [0, 1, 0], sizes = [12, 15, 4], strides = [1, 1, 1]} : vector<12x16x4xf32> to vector<12x15x4xf32>
    %9 = tpu.concatenate %8, %5 in 1 : vector<12x15x4xf32>, vector<12x1x4xf32> -> vector<12x16x4xf32>
    %10 = tpu.concatenate %7, %4, %9 in 2 : vector<12x16x4xf32>, vector<12x16x4xf32>, vector<12x16x4xf32> -> vector<12x16x12xf32>
    %11 = vector.shape_cast %10 : vector<12x16x12xf32> to vector<192x12xf32>
    %12 = vector.extract_strided_slice %11 {offsets = [0, 0], sizes = [160, 12], strides = [1, 1]} : vector<192x12xf32> to vector<160x12xf32>
    %c0_2 = arith.constant 0 : index
    %c0_3 = arith.constant 0 : index
    %c0_4 = arith.constant 0 : index
    %13 = vector.load %arg3[%c0_2, %c0_3, %c0_4] : memref<3x12x8xf32, #tpu.memory_space<vmem>>, vector<1x12x8xf32>
    %14 = vector.shape_cast %13 : vector<1x12x8xf32> to vector<12x8xf32>
    %cst_5 = arith.constant dense<0.000000e+00> : vector<160x8xf32>
    %15 = tpu.matmul %12, %14, %cst_5 {dimension_numbers = #tpu.dot_dimension_numbers<[1], [0], [0], [1], [0, 0, 1, 1], [], []>} : vector<160x12xf32>, vector<12x8xf32>, vector<160x8xf32> -> vector<160x8xf32>
    %16 = vector.extract_strided_slice %11 {offsets = [16, 0], sizes = [160, 12], strides = [1, 1]} : vector<192x12xf32> to vector<160x12xf32>
    %c1 = arith.constant 1 : index
    %c0_6 = arith.constant 0 : index
    %c0_7 = arith.constant 0 : index
    %17 = vector.load %arg3[%c1, %c0_6, %c0_7] : memref<3x12x8xf32, #tpu.memory_space<vmem>>, vector<1x12x8xf32>
    %18 = vector.shape_cast %17 : vector<1x12x8xf32> to vector<12x8xf32>
    %cst_8 = arith.constant dense<0.000000e+00> : vector<160x8xf32>
    %19 = tpu.matmul %16, %18, %cst_8 {dimension_numbers = #tpu.dot_dimension_numbers<[1], [0], [0], [1], [0, 0, 1, 1], [], []>} : vector<160x12xf32>, vector<12x8xf32>, vector<160x8xf32> -> vector<160x8xf32>
    %20 = arith.addf %15, %19 : vector<160x8xf32>
    %21 = vector.extract_strided_slice %11 {offsets = [32, 0], sizes = [160, 12], strides = [1, 1]} : vector<192x12xf32> to vector<160x12xf32>
    %c2 = arith.constant 2 : index
    %c0_9 = arith.constant 0 : index
    %c0_10 = arith.constant 0 : index
    %22 = vector.load %arg3[%c2, %c0_9, %c0_10] : memref<3x12x8xf32, #tpu.memory_space<vmem>>, vector<1x12x8xf32>
    %23 = vector.shape_cast %22 : vector<1x12x8xf32> to vector<12x8xf32>
    %cst_11 = arith.constant dense<0.000000e+00> : vector<160x8xf32>
    %24 = tpu.matmul %21, %23, %cst_11 {dimension_numbers = #tpu.dot_dimension_numbers<[1], [0], [0], [1], [0, 0, 1, 1], [], []>} : vector<160x12xf32>, vector<12x8xf32>, vector<160x8xf32> -> vector<160x8xf32>
    %25 = arith.addf %20, %24 : vector<160x8xf32>
    %c0_12 = arith.constant 0 : index
    %c0_13 = arith.constant 0 : index
    %26 = vector.load %arg4[%c0_12, %c0_13] : memref<1x8xf32, #tpu.memory_space<vmem>>, vector<1x8xf32>
    %27 = vector.broadcast %26 : vector<1x8xf32> to vector<160x8xf32>
    %28 = arith.addf %25, %27 : vector<160x8xf32>
    %cst_14 = arith.constant 0.000000e+00 : f32
    %29 = vector.broadcast %cst_14 : f32 to vector<160x8xf32>
    %30 = arith.maximumf %28, %29 : vector<160x8xf32>
    %31 = tpu.iota {dimensions = array<i32: 0>} : vector<160x1xi32>
    %c1_i32 = arith.constant 1 : i32
    %32 = arith.subi %c1_i32, %1 : i32
    %c0_i32 = arith.constant 0 : i32
    %33 = arith.maxsi %32, %c0_i32 : i32
    %c16_i32 = arith.constant 16 : i32
    %34 = arith.muli %33, %c16_i32 : i32
    %c16_i32_15 = arith.constant 16 : i32
    %35 = arith.subi %c16_i32_15, %1 : i32
    %c1_i32_16 = arith.constant 1 : i32
    %36 = arith.addi %35, %c1_i32_16 : i32
    %c10_i32 = arith.constant 10 : i32
    %37 = arith.minsi %c10_i32, %36 : i32
    %c16_i32_17 = arith.constant 16 : i32
    %38 = arith.muli %37, %c16_i32_17 : i32
    %39 = vector.broadcast %34 : i32 to vector<160x1xi32>
    %40 = arith.cmpi sge, %31, %39 : vector<160x1xi32>
    %41 = vector.broadcast %38 : i32 to vector<160x1xi32>
    %42 = arith.cmpi slt, %31, %41 : vector<160x1xi32>
    %43 = arith.andi %40, %42 : vector<160x1xi1>
    %cst_18 = arith.constant 0.000000e+00 : f32
    %44 = vector.shape_cast %43 : vector<160x1xi1> to vector<160x1xi1>
    %45 = vector.broadcast %44 : vector<160x1xi1> to vector<160x8xi1>
    %46 = vector.broadcast %cst_18 : f32 to vector<160x8xf32>
    %47 = arith.select %45, %30, %46 : vector<160x8xi1>, vector<160x8xf32>
    %48 = vector.shape_cast %47 : vector<160x8xf32> to vector<10x16x8xf32>
    %cst_19 = arith.constant 0.000000e+00 : f32
    %49 = vector.broadcast %cst_19 : f32 to vector<10x1x8xf32>
    %50 = vector.extract_strided_slice %48 {offsets = [0, 0, 0], sizes = [10, 15, 8], strides = [1, 1, 1]} : vector<10x16x8xf32> to vector<10x15x8xf32>
    %51 = tpu.concatenate %49, %50 in 1 : vector<10x1x8xf32>, vector<10x15x8xf32> -> vector<10x16x8xf32>
    %52 = vector.extract_strided_slice %48 {offsets = [0, 1, 0], sizes = [10, 15, 8], strides = [1, 1, 1]} : vector<10x16x8xf32> to vector<10x15x8xf32>
    %53 = tpu.concatenate %52, %49 in 1 : vector<10x15x8xf32>, vector<10x1x8xf32> -> vector<10x16x8xf32>
    %54 = tpu.concatenate %51, %48, %53 in 2 : vector<10x16x8xf32>, vector<10x16x8xf32>, vector<10x16x8xf32> -> vector<10x16x24xf32>
    %55 = vector.shape_cast %54 : vector<10x16x24xf32> to vector<160x24xf32>
    %56 = vector.extract_strided_slice %55 {offsets = [0, 0], sizes = [128, 24], strides = [1, 1]} : vector<160x24xf32> to vector<128x24xf32>
    %c0_20 = arith.constant 0 : index
    %c0_21 = arith.constant 0 : index
    %c0_22 = arith.constant 0 : index
    %57 = vector.load %arg5[%c0_20, %c0_21, %c0_22] : memref<3x24x8xf32, #tpu.memory_space<vmem>>, vector<1x24x8xf32>
    %58 = vector.shape_cast %57 : vector<1x24x8xf32> to vector<24x8xf32>
    %cst_23 = arith.constant dense<0.000000e+00> : vector<128x8xf32>
    %59 = tpu.matmul %56, %58, %cst_23 {dimension_numbers = #tpu.dot_dimension_numbers<[1], [0], [0], [1], [0, 0, 1, 1], [], []>} : vector<128x24xf32>, vector<24x8xf32>, vector<128x8xf32> -> vector<128x8xf32>
    %60 = vector.extract_strided_slice %55 {offsets = [16, 0], sizes = [128, 24], strides = [1, 1]} : vector<160x24xf32> to vector<128x24xf32>
    %c1_24 = arith.constant 1 : index
    %c0_25 = arith.constant 0 : index
    %c0_26 = arith.constant 0 : index
    %61 = vector.load %arg5[%c1_24, %c0_25, %c0_26] : memref<3x24x8xf32, #tpu.memory_space<vmem>>, vector<1x24x8xf32>
    %62 = vector.shape_cast %61 : vector<1x24x8xf32> to vector<24x8xf32>
    %cst_27 = arith.constant dense<0.000000e+00> : vector<128x8xf32>
    %63 = tpu.matmul %60, %62, %cst_27 {dimension_numbers = #tpu.dot_dimension_numbers<[1], [0], [0], [1], [0, 0, 1, 1], [], []>} : vector<128x24xf32>, vector<24x8xf32>, vector<128x8xf32> -> vector<128x8xf32>
    %64 = arith.addf %59, %63 : vector<128x8xf32>
    %65 = vector.extract_strided_slice %55 {offsets = [32, 0], sizes = [128, 24], strides = [1, 1]} : vector<160x24xf32> to vector<128x24xf32>
    %c2_28 = arith.constant 2 : index
    %c0_29 = arith.constant 0 : index
    %c0_30 = arith.constant 0 : index
    %66 = vector.load %arg5[%c2_28, %c0_29, %c0_30] : memref<3x24x8xf32, #tpu.memory_space<vmem>>, vector<1x24x8xf32>
    %67 = vector.shape_cast %66 : vector<1x24x8xf32> to vector<24x8xf32>
    %cst_31 = arith.constant dense<0.000000e+00> : vector<128x8xf32>
    %68 = tpu.matmul %65, %67, %cst_31 {dimension_numbers = #tpu.dot_dimension_numbers<[1], [0], [0], [1], [0, 0, 1, 1], [], []>} : vector<128x24xf32>, vector<24x8xf32>, vector<128x8xf32> -> vector<128x8xf32>
    %69 = arith.addf %64, %68 : vector<128x8xf32>
    %c0_32 = arith.constant 0 : index
    %c0_33 = arith.constant 0 : index
    %70 = vector.load %arg6[%c0_32, %c0_33] : memref<1x8xf32, #tpu.memory_space<vmem>>, vector<1x8xf32>
    %71 = vector.broadcast %70 : vector<1x8xf32> to vector<128x8xf32>
    %72 = arith.addf %69, %71 : vector<128x8xf32>
    %73 = vector.extract_strided_slice %4 {offsets = [2, 0, 0], sizes = [8, 16, 4], strides = [1, 1, 1]} : vector<12x16x4xf32> to vector<8x16x4xf32>
    %74 = vector.shape_cast %73 : vector<8x16x4xf32> to vector<128x4xf32>
    %c0_34 = arith.constant 0 : index
    %c0_35 = arith.constant 0 : index
    %75 = vector.load %arg7[%c0_34, %c0_35] : memref<4x8xf32, #tpu.memory_space<vmem>>, vector<4x8xf32>
    %cst_36 = arith.constant dense<0.000000e+00> : vector<128x8xf32>
    %76 = tpu.matmul %74, %75, %cst_36 {dimension_numbers = #tpu.dot_dimension_numbers<[1], [0], [0], [1], [0, 0, 1, 1], [], []>} : vector<128x4xf32>, vector<4x8xf32>, vector<128x8xf32> -> vector<128x8xf32>
    %c0_37 = arith.constant 0 : index
    %c0_38 = arith.constant 0 : index
    %77 = vector.load %arg8[%c0_37, %c0_38] : memref<1x8xf32, #tpu.memory_space<vmem>>, vector<1x8xf32>
    %78 = vector.broadcast %77 : vector<1x8xf32> to vector<128x8xf32>
    %79 = arith.addf %76, %78 : vector<128x8xf32>
    %80 = arith.addf %72, %79 : vector<128x8xf32>
    %81 = vector.shape_cast %80 : vector<128x8xf32> to vector<8x16x8xf32>
    %82 = vector.shape_cast %81 : vector<8x16x8xf32> to vector<8x8x2x8xf32>
    %83 = vector.extract_strided_slice %82 {offsets = [0, 0, 0, 0], sizes = [8, 8, 1, 8], strides = [1, 1, 1, 1]} : vector<8x8x2x8xf32> to vector<8x8x1x8xf32>
    %84 = vector.shape_cast %83 : vector<8x8x1x8xf32> to vector<8x8x8xf32>
    %85 = vector.extract_strided_slice %82 {offsets = [0, 0, 1, 0], sizes = [8, 8, 1, 8], strides = [1, 1, 1, 1]} : vector<8x8x2x8xf32> to vector<8x8x1x8xf32>
    %86 = vector.shape_cast %85 : vector<8x8x1x8xf32> to vector<8x8x8xf32>
    %87 = arith.addf %84, %86 : vector<8x8x8xf32>
    %88 = vector.shape_cast %87 : vector<8x8x8xf32> to vector<4x2x8x8xf32>
    %89 = vector.extract_strided_slice %88 {offsets = [0, 0, 0, 0], sizes = [4, 1, 8, 8], strides = [1, 1, 1, 1]} : vector<4x2x8x8xf32> to vector<4x1x8x8xf32>
    %90 = vector.shape_cast %89 : vector<4x1x8x8xf32> to vector<4x8x8xf32>
    %91 = vector.extract_strided_slice %88 {offsets = [0, 1, 0, 0], sizes = [4, 1, 8, 8], strides = [1, 1, 1, 1]} : vector<4x2x8x8xf32> to vector<4x1x8x8xf32>
    %92 = vector.shape_cast %91 : vector<4x1x8x8xf32> to vector<4x8x8xf32>
    %93 = arith.addf %90, %92 : vector<4x8x8xf32>
    %cst_39 = arith.constant 2.500000e-01 : f32
    %94 = vector.broadcast %cst_39 : f32 to vector<4x8x8xf32>
    %95 = arith.mulf %93, %94 : vector<4x8x8xf32>
    %c0_40 = arith.constant 0 : index
    %c0_41 = arith.constant 0 : index
    %c0_42 = arith.constant 0 : index
    %c0_43 = arith.constant 0 : index
    %96 = vector.load %arg9[%c0_40, %c0_41, %c0_42, %c0_43] : memref<1x4x8x8xf32, #tpu.memory_space<vmem>>, vector<1x4x8x8xf32>
    %97 = vector.shape_cast %96 : vector<1x4x8x8xf32> to vector<4x8x8xf32>
    %98 = vector.shape_cast %95 : vector<4x8x8xf32> to vector<1x4x8x8xf32>
    tpu.vector_store %arg9[%c0_40, %c0_41, %c0_42, %c0_43], %98 {strides = array<i32>} : memref<1x4x8x8xf32, #tpu.memory_space<vmem>>, vector<1x4x8x8xf32>,
    return
  }
  func.func @transform_0(%arg0: i32, %arg1: i32) -> (i32, i32, i32, i32) {
    %c0_i32 = arith.constant 0 : i32
    %c0_i32_0 = arith.constant 0 : i32
    %c0_i32_1 = arith.constant 0 : i32
    %c0_i32_2 = arith.constant 0 : i32
    return %arg0, %c0_i32, %c0_i32_0, %c0_i32_1 : i32, i32, i32, i32
  }
  func.func @transform_1(%arg0: i32, %arg1: i32) -> (i32, i32, i32) {
    %c0_i32 = arith.constant 0 : i32
    %c0_i32_0 = arith.constant 0 : i32
    %c0_i32_1 = arith.constant 0 : i32
    %c0_i32_2 = arith.constant 0 : i32
    return %c0_i32, %c0_i32_0, %c0_i32_1 : i32, i32, i32
  }
  func.func @transform_2(%arg0: i32, %arg1: i32) -> (i32, i32) {
    %c0_i32 = arith.constant 0 : i32
    %c0_i32_0 = arith.constant 0 : i32
    %c0_i32_1 = arith.constant 0 : i32
    return %c0_i32, %c0_i32_0 : i32, i32
  }
  func.func @transform_3(%arg0: i32, %arg1: i32) -> (i32, i32, i32) {
    %c0_i32 = arith.constant 0 : i32
    %c0_i32_0 = arith.constant 0 : i32
    %c0_i32_1 = arith.constant 0 : i32
    %c0_i32_2 = arith.constant 0 : i32
    return %c0_i32, %c0_i32_0, %c0_i32_1 : i32, i32, i32
  }
  func.func @transform_4(%arg0: i32, %arg1: i32) -> (i32, i32) {
    %c0_i32 = arith.constant 0 : i32
    %c0_i32_0 = arith.constant 0 : i32
    %c0_i32_1 = arith.constant 0 : i32
    return %c0_i32, %c0_i32_0 : i32, i32
  }
  func.func @transform_5(%arg0: i32, %arg1: i32) -> (i32, i32) {
    %c0_i32 = arith.constant 0 : i32
    %c0_i32_0 = arith.constant 0 : i32
    %c0_i32_1 = arith.constant 0 : i32
    return %c0_i32, %c0_i32_0 : i32, i32
  }
  func.func @transform_6(%arg0: i32, %arg1: i32) -> (i32, i32) {
    %c0_i32 = arith.constant 0 : i32
    %c0_i32_0 = arith.constant 0 : i32
    %c0_i32_1 = arith.constant 0 : i32
    return %c0_i32, %c0_i32_0 : i32, i32
  }
  func.func @transform_7(%arg0: i32, %arg1: i32) -> (i32, i32, i32, i32) {
    %c0_i32 = arith.constant 0 : i32
    %c0_i32_0 = arith.constant 0 : i32
    %c0_i32_1 = arith.constant 0 : i32
    return %arg0, %arg1, %c0_i32, %c0_i32_0 : i32, i32, i32, i32
  }
}

</mosaic_0001>

<llo_original>
// kernel: tpu_custom_call.1
$region0: #{tpu_custom_call.1}
  #allocation0 [shape = 'u32[]', space=smem, size = 0x4, offset = 0x4, fixed_abs, tag = 'smem constant byte address 0x4 - core index']
  #allocation1 [shape = 'u32[72,128]{1,0:T(1,128)}', space=vmem, size = 0x9000, scoped, tag = 'internal scratch']
  %s0 = inlined_call_operand.vmem [shape: f32[2,20,16,4], index: 0, kind: input, shape index: {}]
  %s1 = inlined_call_operand.vmem [shape: f32[3,12,8], index: 1, kind: input, shape index: {}]
  %s2 = inlined_call_operand.vmem [shape: f32[1,8], index: 2, kind: input, shape index: {}]
  %s3 = inlined_call_operand.vmem [shape: f32[3,24,8], index: 3, kind: input, shape index: {}]
  %s4 = inlined_call_operand.vmem [shape: f32[1,8], index: 4, kind: input, shape index: {}]
  %s5 = inlined_call_operand.vmem [shape: f32[4,8], index: 5, kind: input, shape index: {}]
  %s6 = inlined_call_operand.vmem [shape: f32[1,8], index: 6, kind: input, shape index: {}]
  %s7 = inlined_call_operand.hbm [shape: f32[2,8,8,8], index: 7, kind: output, shape index: {}]
  %s8 = sld [smem:[#allocation0]]
  $region61: #{tpu_custom_call.1} parent=0
    _
  %s10 = ssub.s32 1, %s8
  %s11 = scalar_select 0, %s10, %s8
  $region1: #{tpu_custom_call.1} parent=0
    #allocation2 [shape = 'u8[32768]{0}', space=vmem, size = 0x8000, scoped, tag = 'output window, operand 0']
    #allocation3 [shape = 's32[2]{0}', space=sflag, size = 0x8, scoped, tag = 'scoped memory for tpu_custom_call.1']
    %12 = vsyncpa [#allocation3], 0
    %s13 = scalar_lea.sflag [#allocation3], 1
    %14 = vsyncpa %s13, 0
    loop: start=0, step=1, limit=6
    $region2: #{tpu_custom_call.1} parent=1 // loop_pre_header
      _
    $region3: #{tpu_custom_call.1} parent=1 // loop_header
      %s16 = sphi 0, %s20
      %p17 = scmp.ge.s32.totalorder %s16, 6
      %s23 = sphi 0, %s35
      %s24 = sphi 0, %s31
      %s25 = sphi 0, %s23
      %s26 = sphi 0, %s24
      %s27 = sphi 0, %s25
      %s28 = sphi 0, %s26
      %s38 = sphi 0, %s40
      %s41 = sphi 0, %s38
      %s42 = sphi 0, %s41
      %s58 = sphi 0, %s42
      %s62 = sphi 0, %s62
      %s64 = sphi 0, %s62
      %s65 = sphi 0, %s64
      %s79 = sphi 0, %s65
      %s83 = sphi 0, %s83
      %s85 = sphi 0, %s83
      %s86 = sphi 0, %s85
      %s100 = sphi 0, %s86
      %s104 = sphi 0, %s104
      %s106 = sphi 0, %s104
      %s107 = sphi 0, %s106
      %s121 = sphi 0, %s107
      %s125 = sphi 0, %s125
      %s127 = sphi 0, %s125
      %s128 = sphi 0, %s127
      %s142 = sphi 0, %s128
      %s146 = sphi 0, %s146
      %s148 = sphi 0, %s146
      %s149 = sphi 0, %s148
      %s163 = sphi 0, %s149
      %s167 = sphi 0, %s167
      %s169 = sphi 0, %s167
      %s170 = sphi 0, %s169
      %s184 = sphi 0, %s170
      %s192 = sphi 0, %s194
      %s195 = sphi 0, %s192
      %s196 = sphi 0, %s195
      %s212 = sphi 0, %s196
    $region4: #{tpu_custom_call.1} parent=1 // loop_header_branch
      %19 = sbr.rel (%p17) target = $region8
    $region5: #{tpu_custom_call.1} parent=1 // loop_body
      %s21 = ssub.s32 %s16, 1
      %s22 = ssub.s32 %s16, 2
      %s29 = sadd.s32 1, %s24
      %p30 = scmp.ge.s32.totalorder %s29, 2
      %s31 = scalar_select %p30, 0, %s29
      %s32 = sadd.s32 1, %s23
      %s33 = scalar_select %p30, %s32, %s23
      %p34 = scmp.ge.s32.totalorder %s33, 2
      %s35 = scalar_select %p34, 0, %s33
      %s36 = ssub.s32 %s23, %s35
      %p37 = scmp.eq.s32.totalorder %s36, 0
      %s39 = sadd.s32 %s38, 1
      %s40 = scalar_select %p37, %s38, %s39
      %p43 = pneg %p37
      %p44 = scmp.eq.s32.totalorder %s16, 3
      %p45 = por %p43, %p44
      %p46 = scmp.ne.s32.totalorder %s38, %s41
      %p47 = scmp.eq.s32.totalorder %s16, 0
      %p48 = por %p46, %p47
      %p49 = scmp.ne.s32.totalorder %s38, %s41
      %p50 = scmp.eq.s32.totalorder %s21, 3
      %p51 = por %p49, %p50
      %p52 = scmp.ne.s32.totalorder %s41, %s42
      %p53 = scmp.eq.s32.totalorder %s21, 0
      %p54 = por %p52, %p53
      %p55 = scmp.ne.s32.totalorder %s41, %s42
      %p56 = scmp.eq.s32.totalorder %s22, 3
      %p57 = por %p55, %p56
      %p59 = scmp.ne.s32.totalorder %s42, %s58
      %p60 = scmp.eq.s32.totalorder %s22, 0
      %p61 = por %p59, %p60
      %s63 = sadd.s32 %s62, 1
      %p66 = scmp.eq.s32.totalorder %s16, 3
      %p67 = scmp.ne.s32.totalorder %s62, %s64
      %p68 = scmp.eq.s32.totalorder %s16, 0
      %p69 = por %p67, %p68
      %p70 = scmp.ne.s32.totalorder %s62, %s64
      %p71 = scmp.eq.s32.totalorder %s21, 3
      %p72 = por %p70, %p71
      %p73 = scmp.ne.s32.totalorder %s64, %s65
      %p74 = scmp.eq.s32.totalorder %s21, 0
      %p75 = por %p73, %p74
      %p76 = scmp.ne.s32.totalorder %s64, %s65
      %p77 = scmp.eq.s32.totalorder %s22, 3
      %p78 = por %p76, %p77
      %p80 = scmp.ne.s32.totalorder %s65, %s79
      %p81 = scmp.eq.s32.totalorder %s22, 0
      %p82 = por %p80, %p81
      %s84 = sadd.s32 %s83, 1
      %p87 = scmp.eq.s32.totalorder %s16, 3
      %p88 = scmp.ne.s32.totalorder %s83, %s85
      %p89 = scmp.eq.s32.totalorder %s16, 0
      %p90 = por %p88, %p89
      %p91 = scmp.ne.s32.totalorder %s83, %s85
      %p92 = scmp.eq.s32.totalorder %s21, 3
      %p93 = por %p91, %p92
      %p94 = scmp.ne.s32.totalorder %s85, %s86
      %p95 = scmp.eq.s32.totalorder %s21, 0
      %p96 = por %p94, %p95
      %p97 = scmp.ne.s32.totalorder %s85, %s86
      %p98 = scmp.eq.s32.totalorder %s22, 3
      %p99 = por %p97, %p98
      %p101 = scmp.ne.s32.totalorder %s86, %s100
      %p102 = scmp.eq.s32.totalorder %s22, 0
      %p103 = por %p101, %p102
      %s105 = sadd.s32 %s104, 1
      %p108 = scmp.eq.s32.totalorder %s16, 3
      %p109 = scmp.ne.s32.totalorder %s104, %s106
      %p110 = scmp.eq.s32.totalorder %s16, 0
      %p111 = por %p109, %p110
      %p112 = scmp.ne.s32.totalorder %s104, %s106
      %p113 = scmp.eq.s32.totalorder %s21, 3
      %p114 = por %p112, %p113
      %p115 = scmp.ne.s32.totalorder %s106, %s107
      %p116 = scmp.eq.s32.totalorder %s21, 0
      %p117 = por %p115, %p116
      %p118 = scmp.ne.s32.totalorder %s106, %s107
      %p119 = scmp.eq.s32.totalorder %s22, 3
      %p120 = por %p118, %p119
      %p122 = scmp.ne.s32.totalorder %s107, %s121
      %p123 = scmp.eq.s32.totalorder %s22, 0
      %p124 = por %p122, %p123
      %s126 = sadd.s32 %s125, 1
      %p129 = scmp.eq.s32.totalorder %s16, 3
      %p130 = scmp.ne.s32.totalorder %s125, %s127
      %p131 = scmp.eq.s32.totalorder %s16, 0
      %p132 = por %p130, %p131
      %p133 = scmp.ne.s32.totalorder %s125, %s127
      %p134 = scmp.eq.s32.totalorder %s21, 3
      %p135 = por %p133, %p134
      %p136 = scmp.ne.s32.totalorder %s127, %s128
      %p137 = scmp.eq.s32.totalorder %s21, 0
      %p138 = por %p136, %p137
      %p139 = scmp.ne.s32.totalorder %s127, %s128
      %p140 = scmp.eq.s32.totalorder %s22, 3
      %p141 = por %p139, %p140
      %p143 = scmp.ne.s32.totalorder %s128, %s142
      %p144 = scmp.eq.s32.totalorder %s22, 0
      %p145 = por %p143, %p144
      %s147 = sadd.s32 %s146, 1
      %p150 = scmp.eq.s32.totalorder %s16, 3
      %p151 = scmp.ne.s32.totalorder %s146, %s148
      %p152 = scmp.eq.s32.totalorder %s16, 0
      %p153 = por %p151, %p152
      %p154 = scmp.ne.s32.totalorder %s146, %s148
      %p155 = scmp.eq.s32.totalorder %s21, 3
      %p156 = por %p154, %p155
      %p157 = scmp.ne.s32.totalorder %s148, %s149
      %p158 = scmp.eq.s32.totalorder %s21, 0
      %p159 = por %p157, %p158
      %p160 = scmp.ne.s32.totalorder %s148, %s149
      %p161 = scmp.eq.s32.totalorder %s22, 3
      %p162 = por %p160, %p161
      %p164 = scmp.ne.s32.totalorder %s149, %s163
      %p165 = scmp.eq.s32.totalorder %s22, 0
      %p166 = por %p164, %p165
      %s168 = sadd.s32 %s167, 1
      %p171 = scmp.eq.s32.totalorder %s16, 3
      %p172 = scmp.ne.s32.totalorder %s167, %s169
      %p173 = scmp.eq.s32.totalorder %s16, 0
      %p174 = por %p172, %p173
      %p175 = scmp.ne.s32.totalorder %s167, %s169
      %p176 = scmp.eq.s32.totalorder %s21, 3
      %p177 = por %p175, %p176
      %p178 = scmp.ne.s32.totalorder %s169, %s170
      %p179 = scmp.eq.s32.totalorder %s21, 0
      %p180 = por %p178, %p179
      %p181 = scmp.ne.s32.totalorder %s169, %s170
      %p182 = scmp.eq.s32.totalorder %s22, 3
      %p183 = por %p181, %p182
      %p185 = scmp.ne.s32.totalorder %s170, %s184
      %p186 = scmp.eq.s32.totalorder %s22, 0
      %p187 = por %p185, %p186
      %s188 = ssub.s32 %s23, %s35
      %s189 = ssub.s32 %s24, %s31
      %s190 = sor.u32 %s188, %s189
      %p191 = scmp.eq.s32.totalorder %s190, 0
      %s193 = sadd.s32 %s192, 1
      %s194 = scalar_select %p191, %s192, %s193
      %p197 = pneg %p191
      %p198 = scmp.eq.s32.totalorder %s16, 3
      %p199 = por %p197, %p198
      %p200 = scmp.ne.s32.totalorder %s192, %s195
      %p201 = scmp.eq.s32.totalorder %s16, 0
      %p202 = por %p200, %p201
      %p203 = scmp.ne.s32.totalorder %s192, %s195
      %p204 = scmp.eq.s32.totalorder %s21, 3
      %p205 = por %p203, %p204
      %p206 = scmp.ne.s32.totalorder %s195, %s196
      %p207 = scmp.eq.s32.totalorder %s21, 0
      %p208 = por %p206, %p207
      %p209 = scmp.ne.s32.totalorder %s195, %s196
      %p210 = scmp.eq.s32.totalorder %s22, 3
      %p211 = por %p209, %p210
      %p213 = scmp.ne.s32.totalorder %s196, %s212
      %p214 = scmp.eq.s32.totalorder %s22, 0
      %p215 = por %p213, %p214
      %p216 = scmp.le.s32.totalorder 1, %s16
      %p217 = scmp.lt.s32.totalorder %s16, 5
      %p218 = pnand %p216, %p217
      %p219 = pneg %p218
      // Predicated region
      $region9: #{tpu_custom_call.1} parent=5 // pred_check
        _
      $region10: #{tpu_custom_call.1} parent=5 // pred_check_branch
        %221 = sbr.rel (%p218) target = $region12
      $region11: #{tpu_custom_call.1} parent=5 // pred_region
        %s222 = ssub.s32 %s16, 1
        // Predicated region
        $region13: #{tpu_custom_call.1} parent=11 // pred_check
          %p223 = pneg %p75
        $region14: #{tpu_custom_call.1} parent=11 // pred_check_branch
          %225 = sbr.rel (%p223) target = $region16
        $region15: #{tpu_custom_call.1} parent=11 // pred_region
          _
        $region16: #{tpu_custom_call.1} parent=11 // pred_fallthru
          _
        // Predicated region
        $region17: #{tpu_custom_call.1} parent=11 // pred_check
          %p226 = pneg %p96
        $region18: #{tpu_custom_call.1} parent=11 // pred_check_branch
          %228 = sbr.rel (%p226) target = $region20
        $region19: #{tpu_custom_call.1} parent=11 // pred_region
          _
        $region20: #{tpu_custom_call.1} parent=11 // pred_fallthru
          _
        // Predicated region
        $region21: #{tpu_custom_call.1} parent=11 // pred_check
          %p229 = pneg %p117
        $region22: #{tpu_custom_call.1} parent=11 // pred_check_branch
          %231 = sbr.rel (%p229) target = $region24
        $region23: #{tpu_custom_call.1} parent=11 // pred_region
          _
        $region24: #{tpu_custom_call.1} parent=11 // pred_fallthru
          _
        // Predicated region
        $region25: #{tpu_custom_call.1} parent=11 // pred_check
          %p232 = pneg %p138
        $region26: #{tpu_custom_call.1} parent=11 // pred_check_branch
          %234 = sbr.rel (%p232) target = $region28
        $region27: #{tpu_custom_call.1} parent=11 // pred_region
          _
        $region28: #{tpu_custom_call.1} parent=11 // pred_fallthru
          _
        // Predicated region
        $region29: #{tpu_custom_call.1} parent=11 // pred_check
          %p235 = pneg %p159
        $region30: #{tpu_custom_call.1} parent=11 // pred_check_branch
          %237 = sbr.rel (%p235) target = $region32
        $region31: #{tpu_custom_call.1} parent=11 // pred_region
          _
        $region32: #{tpu_custom_call.1} parent=11 // pred_fallthru
          _
        // Predicated region
        $region33: #{tpu_custom_call.1} parent=11 // pred_check
          %p238 = pneg %p180
        $region34: #{tpu_custom_call.1} parent=11 // pred_check_branch
          %240 = sbr.rel (%p238) target = $region36
        $region35: #{tpu_custom_call.1} parent=11 // pred_region
          _
        $region36: #{tpu_custom_call.1} parent=11 // pred_fallthru
          _
      $region12: #{tpu_custom_call.1} parent=5 // pred_fallthru
        _
      %p241 = scmp.lt.s32.totalorder %s16, 4
      // Predicated region
      $region37: #{tpu_custom_call.1} parent=5 // pred_check
        %p242 = pneg %p241
      $region38: #{tpu_custom_call.1} parent=5 // pred_check_branch
        %244 = sbr.rel (%p242) target = $region40
      $region39: #{tpu_custom_call.1} parent=5 // pred_region
        // Predicated region
        $region41: #{tpu_custom_call.1} parent=39 // pred_check
          %p245 = pneg %p48
        $region42: #{tpu_custom_call.1} parent=39 // pred_check_branch
          %247 = sbr.rel (%p245) target = $region44
        $region43: #{tpu_custom_call.1} parent=39 // pred_region
          %p248 = scmp.lt.s32.totalorder %s23, 1
          %s249 = scalar_select %p248, %s23, 1
          %s250 = smul.addr %s249, 40
          %s251 = smul.addr %s250, 8
          %s252 = scalar_lea.vmem %s0, %s251
        $region44: #{tpu_custom_call.1} parent=39 // pred_fallthru
          _
      $region40: #{tpu_custom_call.1} parent=5 // pred_fallthru
        _
      %p253 = scmp.le.s32.totalorder 1, %s16
      %p254 = scmp.lt.s32.totalorder %s16, 5
      %p255 = pnand %p253, %p254
      %p256 = pneg %p255
      // Predicated region
      $region45: #{tpu_custom_call.1} parent=5 // pred_check
        _
      $region46: #{tpu_custom_call.1} parent=5 // pred_check_branch
        %258 = sbr.rel (%p255) target = $region48
      $region47: #{tpu_custom_call.1} parent=5 // pred_region
        %s259 = ssub.s32 %s16, 1
        %p260 = scmp.lt.s32.totalorder %s25, 1
        %s261 = scalar_select %p260, %s25, 1
        %s262 = smul.addr %s261, 40
        %s263 = smul.addr %s262, 8
        %s264 = scalar_lea.vmem %s0, %s263
        %p265 = pneg %p54
        %p266 = pneg %p51
        %p267 = pneg %p75
        %p268 = pneg %p72
        %p269 = pneg %p96
        %p270 = pneg %p93
        %p271 = pneg %p117
        %p272 = pneg %p114
        %p273 = pneg %p138
        %p274 = pneg %p135
        %p275 = pneg %p159
        %p276 = pneg %p156
        %p277 = pneg %p180
        %p278 = pneg %p177
        %p279 = pneg %p208
        %p280 = pneg %p205
        %s281 = sand.u32 %s195, 1
        %s282 = scalar_lea.sflag [#allocation3], %s281
        %s283 = sand.u32 %s195, 1
        %s284 = smul.addr %s283, 32
        %s285 = scalar_lea.vmem [#allocation2], %s284
        %p286 = scmp.lt.s32.totalorder %s25, 1
        %s287 = scalar_select %p286, %s25, 1
        %s288 = smul.addr %s287, 40
        %s289 = smul.addr %s288, 8
        %s290 = scalar_lea.vmem %s0, %s289
        %s291 = smul.u32 4, %s26
        %s292 = smul.u32 %s26, 8
        %s293 = smul.u32 %s292, 16
        %s294 = scalar_lea.vmem %s290, %s293
        %v295 = vld [vmem:[%s294] sm:$0xff]
        %v296 = vld [vmem:[%s294 + $0x8] sm:$0xff]
        %v297 = vld [vmem:[%s294 + $0x10] sm:$0xff]
        %v298 = vld [vmem:[%s294 + $0x18] sm:$0xff]
        %v299 = vld [vmem:[%s294 + $0x20] sm:$0xff]
        %v300 = vld [vmem:[%s294 + $0x28] sm:$0xff]
        %v301 = vld [vmem:[%s294 + $0x30] sm:$0xff]
        %v302 = vld [vmem:[%s294 + $0x38] sm:$0xff]
        %v303 = vld [vmem:[%s294 + $0x40] sm:$0xff]
        %v304 = vld [vmem:[%s294 + $0x48] sm:$0xff]
        %v305 = vld [vmem:[%s294 + $0x50] sm:$0xff]
        %v306 = vld [vmem:[%s294 + $0x58] sm:$0xff]
        %v307 = vld [vmem:[%s294 + $0x60] sm:$0xff]
        %v308 = vld [vmem:[%s294 + $0x68] sm:$0xff]
        %v309 = vld [vmem:[%s294 + $0x70] sm:$0xff]
        %v310 = vld [vmem:[%s294 + $0x78] sm:$0xff]
        %v311 = vld [vmem:[%s294 + $0x80] sm:$0xff]
        %v312 = vld [vmem:[%s294 + $0x88] sm:$0xff]
        %v313 = vld [vmem:[%s294 + $0x90] sm:$0xff]
        %v314 = vld [vmem:[%s294 + $0x98] sm:$0xff]
        %v315 = vld [vmem:[%s294 + $0xa0] sm:$0xff]
        %v316 = vld [vmem:[%s294 + $0xa8] sm:$0xff]
        %v317 = vld [vmem:[%s294 + $0xb0] sm:$0xff]
        %v318 = vld [vmem:[%s294 + $0xb8] sm:$0xff]
        %vm343 = vcmask 1040384
        %v344 = vrot.slane %v295, 7
        %v345 = vrot.slane %v296, 7
        %v346 = vsel %vm343, %v344, %v345
        %v347 = vrot.slane %v297, 7
        %v348 = vrot.slane %v298, 7
        %v349 = vsel %vm343, %v347, %v348
        %v350 = vrot.slane %v299, 7
        %v351 = vrot.slane %v300, 7
        %v352 = vsel %vm343, %v350, %v351
        %v353 = vrot.slane %v301, 7
        %v354 = vrot.slane %v302, 7
        %v355 = vsel %vm343, %v353, %v354
        %v356 = vrot.slane %v303, 7
        %v357 = vrot.slane %v304, 7
        %v358 = vsel %vm343, %v356, %v357
        %v359 = vrot.slane %v305, 7
        %v360 = vrot.slane %v306, 7
        %v361 = vsel %vm343, %v359, %v360
        %v362 = vrot.slane %v307, 7
        %v363 = vrot.slane %v308, 7
        %v364 = vsel %vm343, %v362, %v363
        %v365 = vrot.slane %v309, 7
        %v366 = vrot.slane %v310, 7
        %v367 = vsel %vm343, %v365, %v366
        %v368 = vrot.slane %v311, 7
        %v369 = vrot.slane %v312, 7
        %v370 = vsel %vm343, %v368, %v369
        %v371 = vrot.slane %v313, 7
        %v372 = vrot.slane %v314, 7
        %v373 = vsel %vm343, %v371, %v372
        %v374 = vrot.slane %v315, 7
        %v375 = vrot.slane %v316, 7
        %v376 = vsel %vm343, %v374, %v375
        %v377 = vrot.slane %v317, 7
        %v378 = vrot.slane %v318, 7
        %v379 = vsel %vm343, %v377, %v378
        %v404 = vsel %vm343, 0.0, %v344
        %v405 = vsel %vm343, 0.0, %v347
        %v406 = vsel %vm343, 0.0, %v350
        %v407 = vsel %vm343, 0.0, %v353
        %v408 = vsel %vm343, 0.0, %v356
        %v409 = vsel %vm343, 0.0, %v359
        %v410 = vsel %vm343, 0.0, %v362
        %v411 = vsel %vm343, 0.0, %v365
        %v412 = vsel %vm343, 0.0, %v368
        %v413 = vsel %vm343, 0.0, %v371
        %v414 = vsel %vm343, 0.0, %v374
        %v415 = vsel %vm343, 0.0, %v377
        %vm416 = vcmask 1046528
        %v417 = vrot.slane %v295, 1
        %v418 = vrot.slane %v296, 1
        %v419 = vsel %vm416, %v417, %v418
        %v420 = vrot.slane %v297, 1
        %v421 = vrot.slane %v298, 1
        %v422 = vsel %vm416, %v420, %v421
        %v423 = vrot.slane %v299, 1
        %v424 = vrot.slane %v300, 1
        %v425 = vsel %vm416, %v423, %v424
        %v426 = vrot.slane %v301, 1
        %v427 = vrot.slane %v302, 1
        %v428 = vsel %vm416, %v426, %v427
        %v429 = vrot.slane %v303, 1
        %v430 = vrot.slane %v304, 1
        %v431 = vsel %vm416, %v429, %v430
        %v432 = vrot.slane %v305, 1
        %v433 = vrot.slane %v306, 1
        %v434 = vsel %vm416, %v432, %v433
        %v435 = vrot.slane %v307, 1
        %v436 = vrot.slane %v308, 1
        %v437 = vsel %vm416, %v435, %v436
        %v438 = vrot.slane %v309, 1
        %v439 = vrot.slane %v310, 1
        %v440 = vsel %vm416, %v438, %v439
        %v441 = vrot.slane %v311, 1
        %v442 = vrot.slane %v312, 1
        %v443 = vsel %vm416, %v441, %v442
        %v444 = vrot.slane %v313, 1
        %v445 = vrot.slane %v314, 1
        %v446 = vsel %vm416, %v444, %v445
        %v447 = vrot.slane %v315, 1
        %v448 = vrot.slane %v316, 1
        %v449 = vsel %vm416, %v447, %v448
        %v450 = vrot.slane %v317, 1
        %v451 = vrot.slane %v318, 1
        %v452 = vsel %vm416, %v450, %v451
        %v465 = vsel %vm416, %v418, 0.0
        %v466 = vsel %vm416, %v421, 0.0
        %v467 = vsel %vm416, %v424, 0.0
        %v468 = vsel %vm416, %v427, 0.0
        %v469 = vsel %vm416, %v430, 0.0
        %v470 = vsel %vm416, %v433, 0.0
        %v471 = vsel %vm416, %v436, 0.0
        %v472 = vsel %vm416, %v439, 0.0
        %v473 = vsel %vm416, %v442, 0.0
        %v474 = vsel %vm416, %v445, 0.0
        %v475 = vsel %vm416, %v448, 0.0
        %v476 = vsel %vm416, %v451, 0.0
        %477 = vrot.lane.b32.xlu0 %v295, 4
        %v478 = vpop.permute.xlu0 %477
        %479 = vrot.lane.b32.xlu0 %v296, 4
        %v480 = vpop.permute.xlu0 %479
        %481 = vrot.lane.b32.xlu0 %v297, 4
        %v482 = vpop.permute.xlu0 %481
        %483 = vrot.lane.b32.xlu0 %v298, 4
        %v484 = vpop.permute.xlu0 %483
        %485 = vrot.lane.b32.xlu0 %v299, 4
        %v486 = vpop.permute.xlu0 %485
        %487 = vrot.lane.b32.xlu0 %v300, 4
        %v488 = vpop.permute.xlu0 %487
        %489 = vrot.lane.b32.xlu0 %v301, 4
        %v490 = vpop.permute.xlu0 %489
        %491 = vrot.lane.b32.xlu0 %v302, 4
        %v492 = vpop.permute.xlu0 %491
        %493 = vrot.lane.b32.xlu0 %v303, 4
        %v494 = vpop.permute.xlu0 %493
        %495 = vrot.lane.b32.xlu0 %v304, 4
        %v496 = vpop.permute.xlu0 %495
        %497 = vrot.lane.b32.xlu0 %v305, 4
        %v498 = vpop.permute.xlu0 %497
        %499 = vrot.lane.b32.xlu0 %v306, 4
        %v500 = vpop.permute.xlu0 %499
        %501 = vrot.lane.b32.xlu0 %v307, 4
        %v502 = vpop.permute.xlu0 %501
        %503 = vrot.lane.b32.xlu0 %v308, 4
        %v504 = vpop.permute.xlu0 %503
        %505 = vrot.lane.b32.xlu0 %v309, 4
        %v506 = vpop.permute.xlu0 %505
        %507 = vrot.lane.b32.xlu0 %v310, 4
        %v508 = vpop.permute.xlu0 %507
        %509 = vrot.lane.b32.xlu0 %v311, 4
        %v510 = vpop.permute.xlu0 %509
        %511 = vrot.lane.b32.xlu0 %v312, 4
        %v512 = vpop.permute.xlu0 %511
        %513 = vrot.lane.b32.xlu0 %v313, 4
        %v514 = vpop.permute.xlu0 %513
        %515 = vrot.lane.b32.xlu0 %v314, 4
        %v516 = vpop.permute.xlu0 %515
        %517 = vrot.lane.b32.xlu0 %v315, 4
        %v518 = vpop.permute.xlu0 %517
        %519 = vrot.lane.b32.xlu0 %v316, 4
        %v520 = vpop.permute.xlu0 %519
        %521 = vrot.lane.b32.xlu0 %v317, 4
        %v522 = vpop.permute.xlu0 %521
        %523 = vrot.lane.b32.xlu0 %v318, 4
        %v524 = vpop.permute.xlu0 %523
        %561 = vrot.lane.b32.xlu0 %v419, 8
        %v562 = vpop.permute.xlu0 %561
        %563 = vrot.lane.b32.xlu0 %v465, 8
        %v564 = vpop.permute.xlu0 %563
        %565 = vrot.lane.b32.xlu0 %v422, 8
        %v566 = vpop.permute.xlu0 %565
        %567 = vrot.lane.b32.xlu0 %v466, 8
        %v568 = vpop.permute.xlu0 %567
        %569 = vrot.lane.b32.xlu0 %v425, 8
        %v570 = vpop.permute.xlu0 %569
        %571 = vrot.lane.b32.xlu0 %v467, 8
        %v572 = vpop.permute.xlu0 %571
        %573 = vrot.lane.b32.xlu0 %v428, 8
        %v574 = vpop.permute.xlu0 %573
        %575 = vrot.lane.b32.xlu0 %v468, 8
        %v576 = vpop.permute.xlu0 %575
        %577 = vrot.lane.b32.xlu0 %v431, 8
        %v578 = vpop.permute.xlu0 %577
        %579 = vrot.lane.b32.xlu0 %v469, 8
        %v580 = vpop.permute.xlu0 %579
        %581 = vrot.lane.b32.xlu0 %v434, 8
        %v582 = vpop.permute.xlu0 %581
        %583 = vrot.lane.b32.xlu0 %v470, 8
        %v584 = vpop.permute.xlu0 %583
        %585 = vrot.lane.b32.xlu0 %v437, 8
        %v586 = vpop.permute.xlu0 %585
        %587 = vrot.lane.b32.xlu0 %v471, 8
        %v588 = vpop.permute.xlu0 %587
        %589 = vrot.lane.b32.xlu0 %v440, 8
        %v590 = vpop.permute.xlu0 %589
        %591 = vrot.lane.b32.xlu0 %v472, 8
        %v592 = vpop.permute.xlu0 %591
        %593 = vrot.lane.b32.xlu0 %v443, 8
        %v594 = vpop.permute.xlu0 %593
        %595 = vrot.lane.b32.xlu0 %v473, 8
        %v596 = vpop.permute.xlu0 %595
        %597 = vrot.lane.b32.xlu0 %v446, 8
        %v598 = vpop.permute.xlu0 %597
        %599 = vrot.lane.b32.xlu0 %v474, 8
        %v600 = vpop.permute.xlu0 %599
        %601 = vrot.lane.b32.xlu0 %v449, 8
        %v602 = vpop.permute.xlu0 %601
        %603 = vrot.lane.b32.xlu0 %v475, 8
        %v604 = vpop.permute.xlu0 %603
        %605 = vrot.lane.b32.xlu0 %v452, 8
        %v606 = vpop.permute.xlu0 %605
        %607 = vrot.lane.b32.xlu0 %v476, 8
        %v608 = vpop.permute.xlu0 %607
        %vm633 = vcmask 31744
        %v634 = vsel %vm633, %v404, %v478
        %v635 = vsel %vm633, %v346, %v480
        %v636 = vsel %vm633, %v405, %v482
        %v637 = vsel %vm633, %v349, %v484
        %v638 = vsel %vm633, %v406, %v486
        %v639 = vsel %vm633, %v352, %v488
        %v640 = vsel %vm633, %v407, %v490
        %v641 = vsel %vm633, %v355, %v492
        %v642 = vsel %vm633, %v408, %v494
        %v643 = vsel %vm633, %v358, %v496
        %v644 = vsel %vm633, %v409, %v498
        %v645 = vsel %vm633, %v361, %v500
        %v646 = vsel %vm633, %v410, %v502
        %v647 = vsel %vm633, %v364, %v504
        %v648 = vsel %vm633, %v411, %v506
        %v649 = vsel %vm633, %v367, %v508
        %v650 = vsel %vm633, %v412, %v510
        %v651 = vsel %vm633, %v370, %v512
        %v652 = vsel %vm633, %v413, %v514
        %v653 = vsel %vm633, %v373, %v516
        %v654 = vsel %vm633, %v414, %v518
        %v655 = vsel %vm633, %v376, %v520
        %v656 = vsel %vm633, %v415, %v522
        %v657 = vsel %vm633, %v379, %v524
        %vm658 = vcmask 64512
        %v659 = vsel %vm658, %v634, %v562
        %v660 = vsel %vm658, %v635, %v564
        %v661 = vsel %vm658, %v636, %v566
        %v662 = vsel %vm658, %v637, %v568
        %v663 = vsel %vm658, %v638, %v570
        %v664 = vsel %vm658, %v639, %v572
        %v665 = vsel %vm658, %v640, %v574
        %v666 = vsel %vm658, %v641, %v576
        %v667 = vsel %vm658, %v642, %v578
        %v668 = vsel %vm658, %v643, %v580
        %v669 = vsel %vm658, %v644, %v582
        %v670 = vsel %vm658, %v645, %v584
        %v671 = vsel %vm658, %v646, %v586
        %v672 = vsel %vm658, %v647, %v588
        %v673 = vsel %vm658, %v648, %v590
        %v674 = vsel %vm658, %v649, %v592
        %v675 = vsel %vm658, %v650, %v594
        %v676 = vsel %vm658, %v651, %v596
        %v677 = vsel %vm658, %v652, %v598
        %v678 = vsel %vm658, %v653, %v600
        %v679 = vsel %vm658, %v654, %v602
        %v680 = vsel %vm658, %v655, %v604
        %v681 = vsel %vm658, %v656, %v606
        %v682 = vsel %vm658, %v657, %v608
        %v683 = vld [vmem:[%s1] sm:$0xff]
        %v684 = vld [vmem:[%s1 + $0x8] sm:$0xf]
        %s685 = scalar_lea.vmem %s1, 16
        %v686 = vld [vmem:[%s685] sm:$0xff]
        %v687 = vld [vmem:[%s685 + $0x8] sm:$0xf]
        %vm688 = vcmask 97280
        %v690 = vsel %vm688, %v661, 0
        %v693 = vsel %vm688, %v662, 0
        %v696 = vsel %vm688, %v663, 0
        %v699 = vsel %vm688, %v664, 0
        %v702 = vsel %vm688, %v665, 0
        %v705 = vsel %vm688, %v666, 0
        %v708 = vsel %vm688, %v667, 0
        %v711 = vsel %vm688, %v668, 0
        %v714 = vsel %vm688, %v669, 0
        %v717 = vsel %vm688, %v670, 0
        %v720 = vsel %vm688, %v671, 0
        %v723 = vsel %vm688, %v672, 0
        %v726 = vsel %vm688, %v673, 0
        %v729 = vsel %vm688, %v674, 0
        %v732 = vsel %vm688, %v675, 0
        %v735 = vsel %vm688, %v676, 0
        %v738 = vsel %vm688, %v677, 0
        %v741 = vsel %vm688, %v678, 0
        %v744 = vsel %vm688, %v679, 0
        %v747 = vsel %vm688, %v680, 0
        %vm749 = vcmask 1043456
        %v751 = vsel %vm749, %v687, 0
        %753 = vmatpush.msra.mxu0 0.0
        %754 = vmatpush.msra.mxu0 0.0
        %755 = vmatpush.msra.mxu0 0.0
        %756 = vmatpush.msra.mxu0 0.0
        %757 = vmatpush.msra.mxu0 0.0
        %758 = vmatpush.msra.mxu0 0.0
        %759 = vmatpush.msra.mxu0 0.0
        %760 = vmatpush.msra.mxu0 0.0
        %761 = vmatpush.msra.mxu0 0.0
        %762 = vmatpush.msra.mxu0 0.0
        %763 = vmatpush.msra.mxu0 0.0
        %764 = vmatpush.msra.mxu0 0.0
        %765 = vmatpush.msra.mxu0 0.0
        %766 = vmatpush.msra.mxu0 0.0
        %767 = vmatpush.msra.mxu0 %v751
        %768 = vmatpush.msra.mxu0 %v686
        %769 = vmatmul.f32.gmra.mxu0 %v690
        %v770 = vpop.f32.mrf.mxu0
        %v771 = vadd.f32 0.0, %v770
        %772 = vmatmul.f32.gmra.mxu0 %v693
        %v773 = vpop.f32.mrf.mxu0
        %v774 = vadd.f32 0.0, %v773
        %775 = vmatmul.f32.gmra.mxu0 %v696
        %v776 = vpop.f32.mrf.mxu0
        %v777 = vadd.f32 0.0, %v776
        %778 = vmatmul.f32.gmra.mxu0 %v699
        %v779 = vpop.f32.mrf.mxu0
        %v780 = vadd.f32 0.0, %v779
        %781 = vmatmul.f32.gmra.mxu0 %v702
        %v782 = vpop.f32.mrf.mxu0
        %v783 = vadd.f32 0.0, %v782
        %784 = vmatmul.f32.gmra.mxu0 %v705
        %v785 = vpop.f32.mrf.mxu0
        %v786 = vadd.f32 0.0, %v785
        %787 = vmatmul.f32.gmra.mxu0 %v708
        %v788 = vpop.f32.mrf.mxu0
        %v789 = vadd.f32 0.0, %v788
        %790 = vmatmul.f32.gmra.mxu0 %v711
        %v791 = vpop.f32.mrf.mxu0
        %v792 = vadd.f32 0.0, %v791
        %793 = vmatmul.f32.gmra.mxu0 %v714
        %v794 = vpop.f32.mrf.mxu0
        %v795 = vadd.f32 0.0, %v794
        %796 = vmatmul.f32.gmra.mxu0 %v717
        %v797 = vpop.f32.mrf.mxu0
        %v798 = vadd.f32 0.0, %v797
        %799 = vmatmul.f32.gmra.mxu0 %v720
        %v800 = vpop.f32.mrf.mxu0
        %v801 = vadd.f32 0.0, %v800
        %802 = vmatmul.f32.gmra.mxu0 %v723
        %v803 = vpop.f32.mrf.mxu0
        %v804 = vadd.f32 0.0, %v803
        %805 = vmatmul.f32.gmra.mxu0 %v726
        %v806 = vpop.f32.mrf.mxu0
        %v807 = vadd.f32 0.0, %v806
        %808 = vmatmul.f32.gmra.mxu0 %v729
        %v809 = vpop.f32.mrf.mxu0
        %v810 = vadd.f32 0.0, %v809
        %811 = vmatmul.f32.gmra.mxu0 %v732
        %v812 = vpop.f32.mrf.mxu0
        %v813 = vadd.f32 0.0, %v812
        %814 = vmatmul.f32.gmra.mxu0 %v735
        %v815 = vpop.f32.mrf.mxu0
        %v816 = vadd.f32 0.0, %v815
        %817 = vmatmul.f32.gmra.mxu0 %v738
        %v818 = vpop.f32.mrf.mxu0
        %v819 = vadd.f32 0.0, %v818
        %820 = vmatmul.f32.gmra.mxu0 %v741
        %v821 = vpop.f32.mrf.mxu0
        %v822 = vadd.f32 0.0, %v821
        %823 = vmatmul.f32.gmra.mxu0 %v744
        %v824 = vpop.f32.mrf.mxu0
        %v825 = vadd.f32 0.0, %v824
        %826 = vmatmul.f32.gmra.mxu0 %v747
        %v827 = vpop.f32.mrf.mxu0
        %v828 = vadd.f32 0.0, %v827
        %829 = vdwg.mxu0
        %v831 = vsel %vm688, %v659, 0
        %v834 = vsel %vm688, %v660, 0
        %v837 = vsel %vm749, %v684, 0
        %839 = vmatpush.msra.mxu0 0.0
        %840 = vmatpush.msra.mxu0 0.0
        %841 = vmatpush.msra.mxu0 0.0
        %842 = vmatpush.msra.mxu0 0.0
        %843 = vmatpush.msra.mxu0 0.0
        %844 = vmatpush.msra.mxu0 0.0
        %845 = vmatpush.msra.mxu0 0.0
        %846 = vmatpush.msra.mxu0 0.0
        %847 = vmatpush.msra.mxu0 0.0
        %848 = vmatpush.msra.mxu0 0.0
        %849 = vmatpush.msra.mxu0 0.0
        %850 = vmatpush.msra.mxu0 0.0
        %851 = vmatpush.msra.mxu0 0.0
        %852 = vmatpush.msra.mxu0 0.0
        %853 = vmatpush.msra.mxu0 %v837
        %854 = vmatpush.msra.mxu0 %v683
        %855 = vmatmul.f32.gmra.mxu0 %v831
        %v856 = vpop.f32.mrf.mxu0
        %v857 = vadd.f32 %v771, %v856
        %858 = vmatmul.f32.gmra.mxu0 %v834
        %v859 = vpop.f32.mrf.mxu0
        %v860 = vadd.f32 %v774, %v859
        %861 = vmatmul.f32.gmra.mxu0 %v690
        %v862 = vpop.f32.mrf.mxu0
        %v863 = vadd.f32 %v777, %v862
        %864 = vmatmul.f32.gmra.mxu0 %v693
        %v865 = vpop.f32.mrf.mxu0
        %v866 = vadd.f32 %v780, %v865
        %867 = vmatmul.f32.gmra.mxu0 %v696
        %v868 = vpop.f32.mrf.mxu0
        %v869 = vadd.f32 %v783, %v868
        %870 = vmatmul.f32.gmra.mxu0 %v699
        %v871 = vpop.f32.mrf.mxu0
        %v872 = vadd.f32 %v786, %v871
        %873 = vmatmul.f32.gmra.mxu0 %v702
        %v874 = vpop.f32.mrf.mxu0
        %v875 = vadd.f32 %v789, %v874
        %876 = vmatmul.f32.gmra.mxu0 %v705
        %v877 = vpop.f32.mrf.mxu0
        %v878 = vadd.f32 %v792, %v877
        %879 = vmatmul.f32.gmra.mxu0 %v708
        %v880 = vpop.f32.mrf.mxu0
        %v881 = vadd.f32 %v795, %v880
        %882 = vmatmul.f32.gmra.mxu0 %v711
        %v883 = vpop.f32.mrf.mxu0
        %v884 = vadd.f32 %v798, %v883
        %885 = vmatmul.f32.gmra.mxu0 %v714
        %v886 = vpop.f32.mrf.mxu0
        %v887 = vadd.f32 %v801, %v886
        %888 = vmatmul.f32.gmra.mxu0 %v717
        %v889 = vpop.f32.mrf.mxu0
        %v890 = vadd.f32 %v804, %v889
        %891 = vmatmul.f32.gmra.mxu0 %v720
        %v892 = vpop.f32.mrf.mxu0
        %v893 = vadd.f32 %v807, %v892
        %894 = vmatmul.f32.gmra.mxu0 %v723
        %v895 = vpop.f32.mrf.mxu0
        %v896 = vadd.f32 %v810, %v895
        %897 = vmatmul.f32.gmra.mxu0 %v726
        %v898 = vpop.f32.mrf.mxu0
        %v899 = vadd.f32 %v813, %v898
        %900 = vmatmul.f32.gmra.mxu0 %v729
        %v901 = vpop.f32.mrf.mxu0
        %v902 = vadd.f32 %v816, %v901
        %903 = vmatmul.f32.gmra.mxu0 %v732
        %v904 = vpop.f32.mrf.mxu0
        %v905 = vadd.f32 %v819, %v904
        %906 = vmatmul.f32.gmra.mxu0 %v735
        %v907 = vpop.f32.mrf.mxu0
        %v908 = vadd.f32 %v822, %v907
        %909 = vmatmul.f32.gmra.mxu0 %v738
        %v910 = vpop.f32.mrf.mxu0
        %v911 = vadd.f32 %v825, %v910
        %912 = vmatmul.f32.gmra.mxu0 %v741
        %v913 = vpop.f32.mrf.mxu0
        %v914 = vadd.f32 %v828, %v913
        %915 = vdwg.mxu0
        %s916 = scalar_lea.vmem %s1, 32
        %v917 = vld [vmem:[%s916] sm:$0xff]
        %v918 = vld [vmem:[%s916 + $0x8] sm:$0xf]
        %v920 = vsel %vm688, %v681, 0
        %v923 = vsel %vm688, %v682, 0
        %v926 = vsel %vm749, %v918, 0
        %928 = vmatpush.msra.mxu0 0.0
        %929 = vmatpush.msra.mxu0 0.0
        %930 = vmatpush.msra.mxu0 0.0
        %931 = vmatpush.msra.mxu0 0.0
        %932 = vmatpush.msra.mxu0 0.0
        %933 = vmatpush.msra.mxu0 0.0
        %934 = vmatpush.msra.mxu0 0.0
        %935 = vmatpush.msra.mxu0 0.0
        %936 = vmatpush.msra.mxu0 0.0
        %937 = vmatpush.msra.mxu0 0.0
        %938 = vmatpush.msra.mxu0 0.0
        %939 = vmatpush.msra.mxu0 0.0
        %940 = vmatpush.msra.mxu0 0.0
        %941 = vmatpush.msra.mxu0 0.0
        %942 = vmatpush.msra.mxu0 %v926
        %943 = vmatpush.msra.mxu0 %v917
        %944 = vmatmul.f32.gmra.mxu0 %v696
        %v945 = vpop.f32.mrf.mxu0
        %v946 = vadd.f32 0.0, %v945
        %947 = vmatmul.f32.gmra.mxu0 %v699
        %v948 = vpop.f32.mrf.mxu0
        %v949 = vadd.f32 0.0, %v948
        %950 = vmatmul.f32.gmra.mxu0 %v702
        %v951 = vpop.f32.mrf.mxu0
        %v952 = vadd.f32 0.0, %v951
        %953 = vmatmul.f32.gmra.mxu0 %v705
        %v954 = vpop.f32.mrf.mxu0
        %v955 = vadd.f32 0.0, %v954
        %956 = vmatmul.f32.gmra.mxu0 %v708
        %v957 = vpop.f32.mrf.mxu0
        %v958 = vadd.f32 0.0, %v957
        %959 = vmatmul.f32.gmra.mxu0 %v711
        %v960 = vpop.f32.mrf.mxu0
        %v961 = vadd.f32 0.0, %v960
        %962 = vmatmul.f32.gmra.mxu0 %v714
        %v963 = vpop.f32.mrf.mxu0
        %v964 = vadd.f32 0.0, %v963
        %965 = vmatmul.f32.gmra.mxu0 %v717
        %v966 = vpop.f32.mrf.mxu0
        %v967 = vadd.f32 0.0, %v966
        %968 = vmatmul.f32.gmra.mxu0 %v720
        %v969 = vpop.f32.mrf.mxu0
        %v970 = vadd.f32 0.0, %v969
        %971 = vmatmul.f32.gmra.mxu0 %v723
        %v972 = vpop.f32.mrf.mxu0
        %v973 = vadd.f32 0.0, %v972
        %974 = vmatmul.f32.gmra.mxu0 %v726
        %v975 = vpop.f32.mrf.mxu0
        %v976 = vadd.f32 0.0, %v975
        %977 = vmatmul.f32.gmra.mxu0 %v729
        %v978 = vpop.f32.mrf.mxu0
        %v979 = vadd.f32 0.0, %v978
        %980 = vmatmul.f32.gmra.mxu0 %v732
        %v981 = vpop.f32.mrf.mxu0
        %v982 = vadd.f32 0.0, %v981
        %983 = vmatmul.f32.gmra.mxu0 %v735
        %v984 = vpop.f32.mrf.mxu0
        %v985 = vadd.f32 0.0, %v984
        %986 = vmatmul.f32.gmra.mxu0 %v738
        %v987 = vpop.f32.mrf.mxu0
        %v988 = vadd.f32 0.0, %v987
        %989 = vmatmul.f32.gmra.mxu0 %v741
        %v990 = vpop.f32.mrf.mxu0
        %v991 = vadd.f32 0.0, %v990
        %992 = vmatmul.f32.gmra.mxu0 %v744
        %v993 = vpop.f32.mrf.mxu0
        %v994 = vadd.f32 0.0, %v993
        %995 = vmatmul.f32.gmra.mxu0 %v747
        %v996 = vpop.f32.mrf.mxu0
        %v997 = vadd.f32 0.0, %v996
        %998 = vmatmul.f32.gmra.mxu0 %v920
        %v999 = vpop.f32.mrf.mxu0
        %v1000 = vadd.f32 0.0, %v999
        %1001 = vmatmul.f32.gmra.mxu0 %v923
        %v1002 = vpop.f32.mrf.mxu0
        %v1003 = vadd.f32 0.0, %v1002
        %1004 = vdwg.mxu0
        %v1005 = vadd.f32 %v857, %v946
        %v1006 = vadd.f32 %v860, %v949
        %v1007 = vadd.f32 %v863, %v952
        %v1008 = vadd.f32 %v866, %v955
        %v1009 = vadd.f32 %v869, %v958
        %v1010 = vadd.f32 %v872, %v961
        %v1011 = vadd.f32 %v875, %v964
        %v1012 = vadd.f32 %v878, %v967
        %v1013 = vadd.f32 %v881, %v970
        %v1014 = vadd.f32 %v884, %v973
        %v1015 = vadd.f32 %v887, %v976
        %v1016 = vadd.f32 %v890, %v979
        %v1017 = vadd.f32 %v893, %v982
        %v1018 = vadd.f32 %v896, %v985
        %v1019 = vadd.f32 %v899, %v988
        %v1020 = vadd.f32 %v902, %v991
        %v1021 = vadd.f32 %v905, %v994
        %v1022 = vadd.f32 %v908, %v997
        %v1023 = vadd.f32 %v911, %v1000
        %v1024 = vadd.f32 %v914, %v1003
        %v1025 = vld [vmem:[%s2] sm:$0x1]
        %v1027 = vperm.slane %v1025, 0
        %v1029 = vadd.f32 %v1005, %v1027
        %v1030 = vadd.f32 %v1006, %v1027
        %v1031 = vadd.f32 %v1007, %v1027
        %v1032 = vadd.f32 %v1008, %v1027
        %v1033 = vadd.f32 %v1009, %v1027
        %v1034 = vadd.f32 %v1010, %v1027
        %v1035 = vadd.f32 %v1011, %v1027
        %v1036 = vadd.f32 %v1012, %v1027
        %v1037 = vadd.f32 %v1013, %v1027
        %v1038 = vadd.f32 %v1014, %v1027
        %v1039 = vadd.f32 %v1015, %v1027
        %v1040 = vadd.f32 %v1016, %v1027
        %v1041 = vadd.f32 %v1017, %v1027
        %v1042 = vadd.f32 %v1018, %v1027
        %v1043 = vadd.f32 %v1019, %v1027
        %v1044 = vadd.f32 %v1020, %v1027
        %v1045 = vadd.f32 %v1021, %v1027
        %v1046 = vadd.f32 %v1022, %v1027
        %v1047 = vadd.f32 %v1023, %v1027
        %v1048 = vadd.f32 %v1024, %v1027
        %v1049 = vmax.f32 %v1029, 0.0
        %v1050 = vmax.f32 %v1030, 0.0
        %v1051 = vmax.f32 %v1031, 0.0
        %v1052 = vmax.f32 %v1032, 0.0
        %v1053 = vmax.f32 %v1033, 0.0
        %v1054 = vmax.f32 %v1034, 0.0
        %v1055 = vmax.f32 %v1035, 0.0
        %v1056 = vmax.f32 %v1036, 0.0
        %v1057 = vmax.f32 %v1037, 0.0
        %v1058 = vmax.f32 %v1038, 0.0
        %v1059 = vmax.f32 %v1039, 0.0
        %v1060 = vmax.f32 %v1040, 0.0
        %v1061 = vmax.f32 %v1041, 0.0
        %v1062 = vmax.f32 %v1042, 0.0
        %v1063 = vmax.f32 %v1043, 0.0
        %v1064 = vmax.f32 %v1044, 0.0
        %v1065 = vmax.f32 %v1045, 0.0
        %v1066 = vmax.f32 %v1046, 0.0
        %v1067 = vmax.f32 %v1047, 0.0
        %v1068 = vmax.f32 %v1048, 0.0
        %v1069 = vlaneseq
        %v1070 = vshrl.u32 %v1069, 7
        %v1071 = vadd.s32 %v1070, 8
        %v1072 = vadd.s32 %v1070, 16
        %v1073 = vadd.s32 %v1070, 24
        %v1074 = vadd.s32 %v1070, 32
        %v1075 = vadd.s32 %v1070, 40
        %v1076 = vadd.s32 %v1070, 48
        %v1077 = vadd.s32 %v1070, 56
        %v1078 = vadd.s32 %v1070, 64
        %v1079 = vadd.s32 %v1070, 72
        %v1080 = vadd.s32 %v1070, 80
        %v1081 = vadd.s32 %v1070, 88
        %v1082 = vadd.s32 %v1070, 96
        %v1083 = vadd.s32 %v1070, 104
        %v1084 = vadd.s32 %v1070, 112
        %v1085 = vadd.s32 %v1070, 120
        %v1086 = vadd.s32 %v1070, 128
        %v1087 = vadd.s32 %v1070, 136
        %v1088 = vadd.s32 %v1070, 144
        %v1089 = vadd.s32 %v1070, 152
        %s1090 = ssub.s32 1, %s292
        %p1091 = scmp.gt.s32.totalorder %s1090, 0
        %s1092 = scalar_select %p1091, %s1090, 0
        %s1093 = smul.u32 %s1092, 16
        %s1094 = ssub.s32 17, %s292
        %p1095 = scmp.lt.s32.totalorder %s1094, 10
        %s1096 = scalar_select %p1095, %s1094, 10
        %s1097 = smul.u32 %s1096, 16
        %v1098 = vstv %s1093
        %vm1099 = vcmp.ge.s32.totalorder %v1070, %v1098
        %vm1100 = vcmp.ge.s32.totalorder %v1071, %v1098
        %vm1101 = vcmp.ge.s32.totalorder %v1072, %v1098
        %vm1102 = vcmp.ge.s32.totalorder %v1073, %v1098
        %vm1103 = vcmp.ge.s32.totalorder %v1074, %v1098
        %vm1104 = vcmp.ge.s32.totalorder %v1075, %v1098
        %vm1105 = vcmp.ge.s32.totalorder %v1076, %v1098
        %vm1106 = vcmp.ge.s32.totalorder %v1077, %v1098
        %vm1107 = vcmp.ge.s32.totalorder %v1078, %v1098
        %vm1108 = vcmp.ge.s32.totalorder %v1079, %v1098
        %vm1109 = vcmp.ge.s32.totalorder %v1080, %v1098
        %vm1110 = vcmp.ge.s32.totalorder %v1081, %v1098
        %vm1111 = vcmp.ge.s32.totalorder %v1082, %v1098
        %vm1112 = vcmp.ge.s32.totalorder %v1083, %v1098
        %vm1113 = vcmp.ge.s32.totalorder %v1084, %v1098
        %vm1114 = vcmp.ge.s32.totalorder %v1085, %v1098
        %vm1115 = vcmp.ge.s32.totalorder %v1086, %v1098
        %vm1116 = vcmp.ge.s32.totalorder %v1087, %v1098
        %vm1117 = vcmp.ge.s32.totalorder %v1088, %v1098
        %vm1118 = vcmp.ge.s32.totalorder %v1089, %v1098
        %v1119 = vstv %s1097
        %vm1120 = vcmp.lt.s32.totalorder %v1070, %v1119
        %vm1121 = vcmp.lt.s32.totalorder %v1071, %v1119
        %vm1122 = vcmp.lt.s32.totalorder %v1072, %v1119
        %vm1123 = vcmp.lt.s32.totalorder %v1073, %v1119
        %vm1124 = vcmp.lt.s32.totalorder %v1074, %v1119
        %vm1125 = vcmp.lt.s32.totalorder %v1075, %v1119
        %vm1126 = vcmp.lt.s32.totalorder %v1076, %v1119
        %vm1127 = vcmp.lt.s32.totalorder %v1077, %v1119
        %vm1128 = vcmp.lt.s32.totalorder %v1078, %v1119
        %vm1129 = vcmp.lt.s32.totalorder %v1079, %v1119
        %vm1130 = vcmp.lt.s32.totalorder %v1080, %v1119
        %vm1131 = vcmp.lt.s32.totalorder %v1081, %v1119
        %vm1132 = vcmp.lt.s32.totalorder %v1082, %v1119
        %vm1133 = vcmp.lt.s32.totalorder %v1083, %v1119
        %vm1134 = vcmp.lt.s32.totalorder %v1084, %v1119
        %vm1135 = vcmp.lt.s32.totalorder %v1085, %v1119
        %vm1136 = vcmp.lt.s32.totalorder %v1086, %v1119
        %vm1137 = vcmp.lt.s32.totalorder %v1087, %v1119
        %vm1138 = vcmp.lt.s32.totalorder %v1088, %v1119
        %vm1139 = vcmp.lt.s32.totalorder %v1089, %v1119
        %vm1140 = vmand %vm1099, %vm1120
        %vm1141 = vmand %vm1100, %vm1121
        %vm1142 = vmand %vm1101, %vm1122
        %vm1143 = vmand %vm1102, %vm1123
        %vm1144 = vmand %vm1103, %vm1124
        %vm1145 = vmand %vm1104, %vm1125
        %vm1146 = vmand %vm1105, %vm1126
        %vm1147 = vmand %vm1106, %vm1127
        %vm1148 = vmand %vm1107, %vm1128
        %vm1149 = vmand %vm1108, %vm1129
        %vm1150 = vmand %vm1109, %vm1130
        %vm1151 = vmand %vm1110, %vm1131
        %vm1152 = vmand %vm1111, %vm1132
        %vm1153 = vmand %vm1112, %vm1133
        %vm1154 = vmand %vm1113, %vm1134
        %vm1155 = vmand %vm1114, %vm1135
        %vm1156 = vmand %vm1115, %vm1136
        %vm1157 = vmand %vm1116, %vm1137
        %vm1158 = vmand %vm1117, %vm1138
        %vm1159 = vmand %vm1118, %vm1139
        %v1160 = vsel %vm1140, 1, 0
        %v1161 = vsel %vm1141, 1, 0
        %v1162 = vsel %vm1142, 1, 0
        %v1163 = vsel %vm1143, 1, 0
        %v1164 = vsel %vm1144, 1, 0
        %v1165 = vsel %vm1145, 1, 0
        %v1166 = vsel %vm1146, 1, 0
        %v1167 = vsel %vm1147, 1, 0
        %v1168 = vsel %vm1148, 1, 0
        %v1169 = vsel %vm1149, 1, 0
        %v1170 = vsel %vm1150, 1, 0
        %v1171 = vsel %vm1151, 1, 0
        %v1172 = vsel %vm1152, 1, 0
        %v1173 = vsel %vm1153, 1, 0
        %v1174 = vsel %vm1154, 1, 0
        %v1175 = vsel %vm1155, 1, 0
        %v1176 = vsel %vm1156, 1, 0
        %v1177 = vsel %vm1157, 1, 0
        %v1178 = vsel %vm1158, 1, 0
        %v1179 = vsel %vm1159, 1, 0
        %vm1180 = vcmp.eq.s32.totalorder %v1160, 1
        %vm1181 = vcmp.eq.s32.totalorder %v1161, 1
        %vm1182 = vcmp.eq.s32.totalorder %v1162, 1
        %vm1183 = vcmp.eq.s32.totalorder %v1163, 1
        %vm1184 = vcmp.eq.s32.totalorder %v1164, 1
        %vm1185 = vcmp.eq.s32.totalorder %v1165, 1
        %vm1186 = vcmp.eq.s32.totalorder %v1166, 1
        %vm1187 = vcmp.eq.s32.totalorder %v1167, 1
        %vm1188 = vcmp.eq.s32.totalorder %v1168, 1
        %vm1189 = vcmp.eq.s32.totalorder %v1169, 1
        %vm1190 = vcmp.eq.s32.totalorder %v1170, 1
        %vm1191 = vcmp.eq.s32.totalorder %v1171, 1
        %vm1192 = vcmp.eq.s32.totalorder %v1172, 1
        %vm1193 = vcmp.eq.s32.totalorder %v1173, 1
        %vm1194 = vcmp.eq.s32.totalorder %v1174, 1
        %vm1195 = vcmp.eq.s32.totalorder %v1175, 1
        %vm1196 = vcmp.eq.s32.totalorder %v1176, 1
        %vm1197 = vcmp.eq.s32.totalorder %v1177, 1
        %vm1198 = vcmp.eq.s32.totalorder %v1178, 1
        %vm1199 = vcmp.eq.s32.totalorder %v1179, 1
        %v1200 = vsel %vm1180, %v1049, 0.0
        %v1201 = vsel %vm1181, %v1050, 0.0
        %v1202 = vsel %vm1182, %v1051, 0.0
        %v1203 = vsel %vm1183, %v1052, 0.0
        %v1204 = vsel %vm1184, %v1053, 0.0
        %v1205 = vsel %vm1185, %v1054, 0.0
        %v1206 = vsel %vm1186, %v1055, 0.0
        %v1207 = vsel %vm1187, %v1056, 0.0
        %v1208 = vsel %vm1188, %v1057, 0.0
        %v1209 = vsel %vm1189, %v1058, 0.0
        %v1210 = vsel %vm1190, %v1059, 0.0
        %v1211 = vsel %vm1191, %v1060, 0.0
        %v1212 = vsel %vm1192, %v1061, 0.0
        %v1213 = vsel %vm1193, %v1062, 0.0
        %v1214 = vsel %vm1194, %v1063, 0.0
        %v1215 = vsel %vm1195, %v1064, 0.0
        %v1216 = vsel %vm1196, %v1065, 0.0
        %v1217 = vsel %vm1197, %v1066, 0.0
        %v1218 = vsel %vm1198, %v1067, 0.0
        %v1219 = vsel %vm1199, %v1068, 0.0
        %v1240 = vrot.slane %v1200, 7
        %v1241 = vrot.slane %v1201, 7
        %v1242 = vsel %vm343, %v1240, %v1241
        %v1243 = vrot.slane %v1202, 7
        %v1244 = vrot.slane %v1203, 7
        %v1245 = vsel %vm343, %v1243, %v1244
        %v1246 = vrot.slane %v1204, 7
        %v1247 = vrot.slane %v1205, 7
        %v1248 = vsel %vm343, %v1246, %v1247
        %v1249 = vrot.slane %v1206, 7
        %v1250 = vrot.slane %v1207, 7
        %v1251 = vsel %vm343, %v1249, %v1250
        %v1252 = vrot.slane %v1208, 7
        %v1253 = vrot.slane %v1209, 7
        %v1254 = vsel %vm343, %v1252, %v1253
        %v1255 = vrot.slane %v1210, 7
        %v1256 = vrot.slane %v1211, 7
        %v1257 = vsel %vm343, %v1255, %v1256
        %v1258 = vrot.slane %v1212, 7
        %v1259 = vrot.slane %v1213, 7
        %v1260 = vsel %vm343, %v1258, %v1259
        %v1261 = vrot.slane %v1214, 7
        %v1262 = vrot.slane %v1215, 7
        %v1263 = vsel %vm343, %v1261, %v1262
        %v1264 = vrot.slane %v1216, 7
        %v1265 = vrot.slane %v1217, 7
        %v1266 = vsel %vm343, %v1264, %v1265
        %v1267 = vrot.slane %v1218, 7
        %v1268 = vrot.slane %v1219, 7
        %v1269 = vsel %vm343, %v1267, %v1268
        %v1290 = vsel %vm343, 0.0, %v1240
        %v1291 = vsel %vm343, 0.0, %v1243
        %v1292 = vsel %vm343, 0.0, %v1246
        %v1293 = vsel %vm343, 0.0, %v1249
        %v1294 = vsel %vm343, 0.0, %v1252
        %v1295 = vsel %vm343, 0.0, %v1255
        %v1296 = vsel %vm343, 0.0, %v1258
        %v1297 = vsel %vm343, 0.0, %v1261
        %v1298 = vsel %vm343, 0.0, %v1264
        %v1299 = vsel %vm343, 0.0, %v1267
        %v1300 = vrot.slane %v1200, 1
        %v1301 = vrot.slane %v1201, 1
        %v1302 = vsel %vm416, %v1300, %v1301
        %v1303 = vrot.slane %v1202, 1
        %v1304 = vrot.slane %v1203, 1
        %v1305 = vsel %vm416, %v1303, %v1304
        %v1306 = vrot.slane %v1204, 1
        %v1307 = vrot.slane %v1205, 1
        %v1308 = vsel %vm416, %v1306, %v1307
        %v1309 = vrot.slane %v1206, 1
        %v1310 = vrot.slane %v1207, 1
        %v1311 = vsel %vm416, %v1309, %v1310
        %v1312 = vrot.slane %v1208, 1
        %v1313 = vrot.slane %v1209, 1
        %v1314 = vsel %vm416, %v1312, %v1313
        %v1315 = vrot.slane %v1210, 1
        %v1316 = vrot.slane %v1211, 1
        %v1317 = vsel %vm416, %v1315, %v1316
        %v1318 = vrot.slane %v1212, 1
        %v1319 = vrot.slane %v1213, 1
        %v1320 = vsel %vm416, %v1318, %v1319
        %v1321 = vrot.slane %v1214, 1
        %v1322 = vrot.slane %v1215, 1
        %v1323 = vsel %vm416, %v1321, %v1322
        %v1324 = vrot.slane %v1216, 1
        %v1325 = vrot.slane %v1217, 1
        %v1326 = vsel %vm416, %v1324, %v1325
        %v1327 = vrot.slane %v1218, 1
        %v1328 = vrot.slane %v1219, 1
        %v1329 = vsel %vm416, %v1327, %v1328
        %v1340 = vsel %vm416, %v1301, 0.0
        %v1341 = vsel %vm416, %v1304, 0.0
        %v1342 = vsel %vm416, %v1307, 0.0
        %v1343 = vsel %vm416, %v1310, 0.0
        %v1344 = vsel %vm416, %v1313, 0.0
        %v1345 = vsel %vm416, %v1316, 0.0
        %v1346 = vsel %vm416, %v1319, 0.0
        %v1347 = vsel %vm416, %v1322, 0.0
        %v1348 = vsel %vm416, %v1325, 0.0
        %v1349 = vsel %vm416, %v1328, 0.0
        %1350 = vrot.lane.b32.xlu0 %v1200, 8
        %v1351 = vpop.permute.xlu0 %1350
        %1352 = vrot.lane.b32.xlu0 %v1201, 8
        %v1353 = vpop.permute.xlu0 %1352
        %1354 = vrot.lane.b32.xlu0 %v1202, 8
        %v1355 = vpop.permute.xlu0 %1354
        %1356 = vrot.lane.b32.xlu0 %v1203, 8
        %v1357 = vpop.permute.xlu0 %1356
        %1358 = vrot.lane.b32.xlu0 %v1204, 8
        %v1359 = vpop.permute.xlu0 %1358
        %1360 = vrot.lane.b32.xlu0 %v1205, 8
        %v1361 = vpop.permute.xlu0 %1360
        %1362 = vrot.lane.b32.xlu0 %v1206, 8
        %v1363 = vpop.permute.xlu0 %1362
        %1364 = vrot.lane.b32.xlu0 %v1207, 8
        %v1365 = vpop.permute.xlu0 %1364
        %1366 = vrot.lane.b32.xlu0 %v1208, 8
        %v1367 = vpop.permute.xlu0 %1366
        %1368 = vrot.lane.b32.xlu0 %v1209, 8
        %v1369 = vpop.permute.xlu0 %1368
        %1370 = vrot.lane.b32.xlu0 %v1210, 8
        %v1371 = vpop.permute.xlu0 %1370
        %1372 = vrot.lane.b32.xlu0 %v1211, 8
        %v1373 = vpop.permute.xlu0 %1372
        %1374 = vrot.lane.b32.xlu0 %v1212, 8
        %v1375 = vpop.permute.xlu0 %1374
        %1376 = vrot.lane.b32.xlu0 %v1213, 8
        %v1377 = vpop.permute.xlu0 %1376
        %1378 = vrot.lane.b32.xlu0 %v1214, 8
        %v1379 = vpop.permute.xlu0 %1378
        %1380 = vrot.lane.b32.xlu0 %v1215, 8
        %v1381 = vpop.permute.xlu0 %1380
        %1382 = vrot.lane.b32.xlu0 %v1216, 8
        %v1383 = vpop.permute.xlu0 %1382
        %1384 = vrot.lane.b32.xlu0 %v1217, 8
        %v1385 = vpop.permute.xlu0 %1384
        %1386 = vrot.lane.b32.xlu0 %v1218, 8
        %v1387 = vpop.permute.xlu0 %1386
        %1388 = vrot.lane.b32.xlu0 %v1219, 8
        %v1389 = vpop.permute.xlu0 %1388
        %1420 = vrot.lane.b32.xlu0 %v1302, 16
        %v1421 = vpop.permute.xlu0 %1420
        %1422 = vrot.lane.b32.xlu0 %v1340, 16
        %v1423 = vpop.permute.xlu0 %1422
        %1424 = vrot.lane.b32.xlu0 %v1305, 16
        %v1425 = vpop.permute.xlu0 %1424
        %1426 = vrot.lane.b32.xlu0 %v1341, 16
        %v1427 = vpop.permute.xlu0 %1426
        %1428 = vrot.lane.b32.xlu0 %v1308, 16
        %v1429 = vpop.permute.xlu0 %1428
        %1430 = vrot.lane.b32.xlu0 %v1342, 16
        %v1431 = vpop.permute.xlu0 %1430
        %1432 = vrot.lane.b32.xlu0 %v1311, 16
        %v1433 = vpop.permute.xlu0 %1432
        %1434 = vrot.lane.b32.xlu0 %v1343, 16
        %v1435 = vpop.permute.xlu0 %1434
        %1436 = vrot.lane.b32.xlu0 %v1314, 16
        %v1437 = vpop.permute.xlu0 %1436
        %1438 = vrot.lane.b32.xlu0 %v1344, 16
        %v1439 = vpop.permute.xlu0 %1438
        %1440 = vrot.lane.b32.xlu0 %v1317, 16
        %v1441 = vpop.permute.xlu0 %1440
        %1442 = vrot.lane.b32.xlu0 %v1345, 16
        %v1443 = vpop.permute.xlu0 %1442
        %1444 = vrot.lane.b32.xlu0 %v1320, 16
        %v1445 = vpop.permute.xlu0 %1444
        %1446 = vrot.lane.b32.xlu0 %v1346, 16
        %v1447 = vpop.permute.xlu0 %1446
        %1448 = vrot.lane.b32.xlu0 %v1323, 16
        %v1449 = vpop.permute.xlu0 %1448
        %1450 = vrot.lane.b32.xlu0 %v1347, 16
        %v1451 = vpop.permute.xlu0 %1450
        %1452 = vrot.lane.b32.xlu0 %v1326, 16
        %v1453 = vpop.permute.xlu0 %1452
        %1454 = vrot.lane.b32.xlu0 %v1348, 16
        %v1455 = vpop.permute.xlu0 %1454
        %1456 = vrot.lane.b32.xlu0 %v1329, 16
        %v1457 = vpop.permute.xlu0 %1456
        %1458 = vrot.lane.b32.xlu0 %v1349, 16
        %v1459 = vpop.permute.xlu0 %1458
        %v1480 = vsel %vm658, %v1290, %v1351
        %v1481 = vsel %vm658, %v1242, %v1353
        %v1482 = vsel %vm658, %v1291, %v1355
        %v1483 = vsel %vm658, %v1245, %v1357
        %v1484 = vsel %vm658, %v1292, %v1359
        %v1485 = vsel %vm658, %v1248, %v1361
        %v1486 = vsel %vm658, %v1293, %v1363
        %v1487 = vsel %vm658, %v1251, %v1365
        %v1488 = vsel %vm658, %v1294, %v1367
        %v1489 = vsel %vm658, %v1254, %v1369
        %v1490 = vsel %vm658, %v1295, %v1371
        %v1491 = vsel %vm658, %v1257, %v1373
        %v1492 = vsel %vm658, %v1296, %v1375
        %v1493 = vsel %vm658, %v1260, %v1377
        %v1494 = vsel %vm658, %v1297, %v1379
        %v1495 = vsel %vm658, %v1263, %v1381
        %v1496 = vsel %vm658, %v1298, %v1383
        %v1497 = vsel %vm658, %v1266, %v1385
        %v1498 = vsel %vm658, %v1299, %v1387
        %v1499 = vsel %vm658, %v1269, %v1389
        %vm1500 = vcmask 130048
        %v1501 = vsel %vm1500, %v1480, %v1421
        %v1502 = vsel %vm1500, %v1481, %v1423
        %v1503 = vsel %vm1500, %v1482, %v1425
        %v1504 = vsel %vm1500, %v1483, %v1427
        %v1505 = vsel %vm1500, %v1484, %v1429
        %v1506 = vsel %vm1500, %v1485, %v1431
        %v1507 = vsel %vm1500, %v1486, %v1433
        %v1508 = vsel %vm1500, %v1487, %v1435
        %v1509 = vsel %vm1500, %v1488, %v1437
        %v1510 = vsel %vm1500, %v1489, %v1439
        %v1511 = vsel %vm1500, %v1490, %v1441
        %v1512 = vsel %vm1500, %v1491, %v1443
        %v1513 = vsel %vm1500, %v1492, %v1445
        %v1514 = vsel %vm1500, %v1493, %v1447
        %v1515 = vsel %vm1500, %v1494, %v1449
        %v1516 = vsel %vm1500, %v1495, %v1451
        %v1517 = vsel %vm1500, %v1496, %v1453
        %v1518 = vsel %vm1500, %v1497, %v1455
        %v1519 = vsel %vm1500, %v1498, %v1457
        %v1520 = vsel %vm1500, %v1499, %v1459
        %v1521 = vld [vmem:[%s3] sm:$0xff]
        %v1522 = vld [vmem:[%s3 + $0x8] sm:$0xff]
        %v1523 = vld [vmem:[%s3 + $0x10] sm:$0xff]
        %s1524 = scalar_lea.vmem %s3, 24
        %v1525 = vld [vmem:[%s1524] sm:$0xff]
        %v1526 = vld [vmem:[%s1524 + $0x8] sm:$0xff]
        %v1527 = vld [vmem:[%s1524 + $0x10] sm:$0xff]
        %vm1528 = vcmask 195584
        %v1530 = vsel %vm1528, %v1503, 0
        %v1533 = vsel %vm1528, %v1504, 0
        %v1536 = vsel %vm1528, %v1505, 0
        %v1539 = vsel %vm1528, %v1506, 0
        %v1542 = vsel %vm1528, %v1507, 0
        %v1545 = vsel %vm1528, %v1508, 0
        %v1548 = vsel %vm1528, %v1509, 0
        %v1551 = vsel %vm1528, %v1510, 0
        %v1554 = vsel %vm1528, %v1511, 0
        %v1557 = vsel %vm1528, %v1512, 0
        %v1560 = vsel %vm1528, %v1513, 0
        %v1563 = vsel %vm1528, %v1514, 0
        %v1566 = vsel %vm1528, %v1515, 0
        %v1569 = vsel %vm1528, %v1516, 0
        %v1572 = vsel %vm1528, %v1517, 0
        %v1575 = vsel %vm1528, %v1518, 0
        %1577 = vmatpush.msra.mxu0 0.0
        %1578 = vmatpush.msra.mxu0 0.0
        %1579 = vmatpush.msra.mxu0 0.0
        %1580 = vmatpush.msra.mxu0 0.0
        %1581 = vmatpush.msra.mxu0 0.0
        %1582 = vmatpush.msra.mxu0 0.0
        %1583 = vmatpush.msra.mxu0 0.0
        %1584 = vmatpush.msra.mxu0 0.0
        %1585 = vmatpush.msra.mxu0 0.0
        %1586 = vmatpush.msra.mxu0 0.0
        %1587 = vmatpush.msra.mxu0 0.0
        %1588 = vmatpush.msra.mxu0 0.0
        %1589 = vmatpush.msra.mxu0 0.0
        %1590 = vmatpush.msra.mxu0 %v1527
        %1591 = vmatpush.msra.mxu0 %v1526
        %1592 = vmatpush.msra.mxu0 %v1525
        %1593 = vmatmul.f32.gmra.mxu0 %v1530
        %v1594 = vpop.f32.mrf.mxu0
        %v1595 = vadd.f32 0.0, %v1594
        %1596 = vmatmul.f32.gmra.mxu0 %v1533
        %v1597 = vpop.f32.mrf.mxu0
        %v1598 = vadd.f32 0.0, %v1597
        %1599 = vmatmul.f32.gmra.mxu0 %v1536
        %v1600 = vpop.f32.mrf.mxu0
        %v1601 = vadd.f32 0.0, %v1600
        %1602 = vmatmul.f32.gmra.mxu0 %v1539
        %v1603 = vpop.f32.mrf.mxu0
        %v1604 = vadd.f32 0.0, %v1603
        %1605 = vmatmul.f32.gmra.mxu0 %v1542
        %v1606 = vpop.f32.mrf.mxu0
        %v1607 = vadd.f32 0.0, %v1606
        %1608 = vmatmul.f32.gmra.mxu0 %v1545
        %v1609 = vpop.f32.mrf.mxu0
        %v1610 = vadd.f32 0.0, %v1609
        %1611 = vmatmul.f32.gmra.mxu0 %v1548
        %v1612 = vpop.f32.mrf.mxu0
        %v1613 = vadd.f32 0.0, %v1612
        %1614 = vmatmul.f32.gmra.mxu0 %v1551
        %v1615 = vpop.f32.mrf.mxu0
        %v1616 = vadd.f32 0.0, %v1615
        %1617 = vmatmul.f32.gmra.mxu0 %v1554
        %v1618 = vpop.f32.mrf.mxu0
        %v1619 = vadd.f32 0.0, %v1618
        %1620 = vmatmul.f32.gmra.mxu0 %v1557
        %v1621 = vpop.f32.mrf.mxu0
        %v1622 = vadd.f32 0.0, %v1621
        %1623 = vmatmul.f32.gmra.mxu0 %v1560
        %v1624 = vpop.f32.mrf.mxu0
        %v1625 = vadd.f32 0.0, %v1624
        %1626 = vmatmul.f32.gmra.mxu0 %v1563
        %v1627 = vpop.f32.mrf.mxu0
        %v1628 = vadd.f32 0.0, %v1627
        %1629 = vmatmul.f32.gmra.mxu0 %v1566
        %v1630 = vpop.f32.mrf.mxu0
        %v1631 = vadd.f32 0.0, %v1630
        %1632 = vmatmul.f32.gmra.mxu0 %v1569
        %v1633 = vpop.f32.mrf.mxu0
        %v1634 = vadd.f32 0.0, %v1633
        %1635 = vmatmul.f32.gmra.mxu0 %v1572
        %v1636 = vpop.f32.mrf.mxu0
        %v1637 = vadd.f32 0.0, %v1636
        %1638 = vmatmul.f32.gmra.mxu0 %v1575
        %v1639 = vpop.f32.mrf.mxu0
        %v1640 = vadd.f32 0.0, %v1639
        %1641 = vdwg.mxu0
        %v1643 = vsel %vm1528, %v1501, 0
        %v1646 = vsel %vm1528, %v1502, 0
        %1648 = vmatpush.msra.mxu0 0.0
        %1649 = vmatpush.msra.mxu0 0.0
        %1650 = vmatpush.msra.mxu0 0.0
        %1651 = vmatpush.msra.mxu0 0.0
        %1652 = vmatpush.msra.mxu0 0.0
        %1653 = vmatpush.msra.mxu0 0.0
        %1654 = vmatpush.msra.mxu0 0.0
        %1655 = vmatpush.msra.mxu0 0.0
        %1656 = vmatpush.msra.mxu0 0.0
        %1657 = vmatpush.msra.mxu0 0.0
        %1658 = vmatpush.msra.mxu0 0.0
        %1659 = vmatpush.msra.mxu0 0.0
        %1660 = vmatpush.msra.mxu0 0.0
        %1661 = vmatpush.msra.mxu0 %v1523
        %1662 = vmatpush.msra.mxu0 %v1522
        %1663 = vmatpush.msra.mxu0 %v1521
        %1664 = vmatmul.f32.gmra.mxu0 %v1643
        %v1665 = vpop.f32.mrf.mxu0
        %v1666 = vadd.f32 %v1595, %v1665
        %1667 = vmatmul.f32.gmra.mxu0 %v1646
        %v1668 = vpop.f32.mrf.mxu0
        %v1669 = vadd.f32 %v1598, %v1668
        %1670 = vmatmul.f32.gmra.mxu0 %v1530
        %v1671 = vpop.f32.mrf.mxu0
        %v1672 = vadd.f32 %v1601, %v1671
        %1673 = vmatmul.f32.gmra.mxu0 %v1533
        %v1674 = vpop.f32.mrf.mxu0
        %v1675 = vadd.f32 %v1604, %v1674
        %1676 = vmatmul.f32.gmra.mxu0 %v1536
        %v1677 = vpop.f32.mrf.mxu0
        %v1678 = vadd.f32 %v1607, %v1677
        %1679 = vmatmul.f32.gmra.mxu0 %v1539
        %v1680 = vpop.f32.mrf.mxu0
        %v1681 = vadd.f32 %v1610, %v1680
        %1682 = vmatmul.f32.gmra.mxu0 %v1542
        %v1683 = vpop.f32.mrf.mxu0
        %v1684 = vadd.f32 %v1613, %v1683
        %1685 = vmatmul.f32.gmra.mxu0 %v1545
        %v1686 = vpop.f32.mrf.mxu0
        %v1687 = vadd.f32 %v1616, %v1686
        %1688 = vmatmul.f32.gmra.mxu0 %v1548
        %v1689 = vpop.f32.mrf.mxu0
        %v1690 = vadd.f32 %v1619, %v1689
        %1691 = vmatmul.f32.gmra.mxu0 %v1551
        %v1692 = vpop.f32.mrf.mxu0
        %v1693 = vadd.f32 %v1622, %v1692
        %1694 = vmatmul.f32.gmra.mxu0 %v1554
        %v1695 = vpop.f32.mrf.mxu0
        %v1696 = vadd.f32 %v1625, %v1695
        %1697 = vmatmul.f32.gmra.mxu0 %v1557
        %v1698 = vpop.f32.mrf.mxu0
        %v1699 = vadd.f32 %v1628, %v1698
        %1700 = vmatmul.f32.gmra.mxu0 %v1560
        %v1701 = vpop.f32.mrf.mxu0
        %v1702 = vadd.f32 %v1631, %v1701
        %1703 = vmatmul.f32.gmra.mxu0 %v1563
        %v1704 = vpop.f32.mrf.mxu0
        %v1705 = vadd.f32 %v1634, %v1704
        %1706 = vmatmul.f32.gmra.mxu0 %v1566
        %v1707 = vpop.f32.mrf.mxu0
        %v1708 = vadd.f32 %v1637, %v1707
        %1709 = vmatmul.f32.gmra.mxu0 %v1569
        %v1710 = vpop.f32.mrf.mxu0
        %v1711 = vadd.f32 %v1640, %v1710
        %1712 = vdwg.mxu0
        %s1713 = scalar_lea.vmem %s3, 48
        %v1714 = vld [vmem:[%s1713] sm:$0xff]
        %v1715 = vld [vmem:[%s1713 + $0x8] sm:$0xff]
        %v1716 = vld [vmem:[%s1713 + $0x10] sm:$0xff]
        %v1718 = vsel %vm1528, %v1519, 0
        %v1721 = vsel %vm1528, %v1520, 0
        %1723 = vmatpush.msra.mxu0 0.0
        %1724 = vmatpush.msra.mxu0 0.0
        %1725 = vmatpush.msra.mxu0 0.0
        %1726 = vmatpush.msra.mxu0 0.0
        %1727 = vmatpush.msra.mxu0 0.0
        %1728 = vmatpush.msra.mxu0 0.0
        %1729 = vmatpush.msra.mxu0 0.0
        %1730 = vmatpush.msra.mxu0 0.0
        %1731 = vmatpush.msra.mxu0 0.0
        %1732 = vmatpush.msra.mxu0 0.0
        %1733 = vmatpush.msra.mxu0 0.0
        %1734 = vmatpush.msra.mxu0 0.0
        %1735 = vmatpush.msra.mxu0 0.0
        %1736 = vmatpush.msra.mxu0 %v1716
        %1737 = vmatpush.msra.mxu0 %v1715
        %1738 = vmatpush.msra.mxu0 %v1714
        %1739 = vmatmul.f32.gmra.mxu0 %v1536
        %v1740 = vpop.f32.mrf.mxu0
        %v1741 = vadd.f32 0.0, %v1740
        %1742 = vmatmul.f32.gmra.mxu0 %v1539
        %v1743 = vpop.f32.mrf.mxu0
        %v1744 = vadd.f32 0.0, %v1743
        %1745 = vmatmul.f32.gmra.mxu0 %v1542
        %v1746 = vpop.f32.mrf.mxu0
        %v1747 = vadd.f32 0.0, %v1746
        %1748 = vmatmul.f32.gmra.mxu0 %v1545
        %v1749 = vpop.f32.mrf.mxu0
        %v1750 = vadd.f32 0.0, %v1749
        %1751 = vmatmul.f32.gmra.mxu0 %v1548
        %v1752 = vpop.f32.mrf.mxu0
        %v1753 = vadd.f32 0.0, %v1752
        %1754 = vmatmul.f32.gmra.mxu0 %v1551
        %v1755 = vpop.f32.mrf.mxu0
        %v1756 = vadd.f32 0.0, %v1755
        %1757 = vmatmul.f32.gmra.mxu0 %v1554
        %v1758 = vpop.f32.mrf.mxu0
        %v1759 = vadd.f32 0.0, %v1758
        %1760 = vmatmul.f32.gmra.mxu0 %v1557
        %v1761 = vpop.f32.mrf.mxu0
        %v1762 = vadd.f32 0.0, %v1761
        %1763 = vmatmul.f32.gmra.mxu0 %v1560
        %v1764 = vpop.f32.mrf.mxu0
        %v1765 = vadd.f32 0.0, %v1764
        %1766 = vmatmul.f32.gmra.mxu0 %v1563
        %v1767 = vpop.f32.mrf.mxu0
        %v1768 = vadd.f32 0.0, %v1767
        %1769 = vmatmul.f32.gmra.mxu0 %v1566
        %v1770 = vpop.f32.mrf.mxu0
        %v1771 = vadd.f32 0.0, %v1770
        %1772 = vmatmul.f32.gmra.mxu0 %v1569
        %v1773 = vpop.f32.mrf.mxu0
        %v1774 = vadd.f32 0.0, %v1773
        %1775 = vmatmul.f32.gmra.mxu0 %v1572
        %v1776 = vpop.f32.mrf.mxu0
        %v1777 = vadd.f32 0.0, %v1776
        %1778 = vmatmul.f32.gmra.mxu0 %v1575
        %v1779 = vpop.f32.mrf.mxu0
        %v1780 = vadd.f32 0.0, %v1779
        %1781 = vmatmul.f32.gmra.mxu0 %v1718
        %v1782 = vpop.f32.mrf.mxu0
        %v1783 = vadd.f32 0.0, %v1782
        %1784 = vmatmul.f32.gmra.mxu0 %v1721
        %v1785 = vpop.f32.mrf.mxu0
        %v1786 = vadd.f32 0.0, %v1785
        %1787 = vdwg.mxu0
        %v1788 = vadd.f32 %v1666, %v1741
        %v1789 = vadd.f32 %v1669, %v1744
        %v1790 = vadd.f32 %v1672, %v1747
        %v1791 = vadd.f32 %v1675, %v1750
        %v1792 = vadd.f32 %v1678, %v1753
        %v1793 = vadd.f32 %v1681, %v1756
        %v1794 = vadd.f32 %v1684, %v1759
        %v1795 = vadd.f32 %v1687, %v1762
        %v1796 = vadd.f32 %v1690, %v1765
        %v1797 = vadd.f32 %v1693, %v1768
        %v1798 = vadd.f32 %v1696, %v1771
        %v1799 = vadd.f32 %v1699, %v1774
        %v1800 = vadd.f32 %v1702, %v1777
        %v1801 = vadd.f32 %v1705, %v1780
        %v1802 = vadd.f32 %v1708, %v1783
        %v1803 = vadd.f32 %v1711, %v1786
        %v1804 = vld [vmem:[%s4] sm:$0x1]
        %v1806 = vperm.slane %v1804, 0
        %v1808 = vadd.f32 %v1788, %v1806
        %v1809 = vadd.f32 %v1789, %v1806
        %v1810 = vadd.f32 %v1790, %v1806
        %v1811 = vadd.f32 %v1791, %v1806
        %v1812 = vadd.f32 %v1792, %v1806
        %v1813 = vadd.f32 %v1793, %v1806
        %v1814 = vadd.f32 %v1794, %v1806
        %v1815 = vadd.f32 %v1795, %v1806
        %v1816 = vadd.f32 %v1796, %v1806
        %v1817 = vadd.f32 %v1797, %v1806
        %v1818 = vadd.f32 %v1798, %v1806
        %v1819 = vadd.f32 %v1799, %v1806
        %v1820 = vadd.f32 %v1800, %v1806
        %v1821 = vadd.f32 %v1801, %v1806
        %v1822 = vadd.f32 %v1802, %v1806
        %v1823 = vadd.f32 %v1803, %v1806
        %v1824 = vld [vmem:[%s5] sm:$0xf]
        %v1825 = vld [vmem:[%s6] sm:$0x1]
        %v1827 = vperm.slane %v1825, 0
        %v1829 = vsel %vm633, %v299, 0
        %v1831 = vsel %vm633, %v300, 0
        %v1833 = vsel %vm633, %v301, 0
        %v1835 = vsel %vm633, %v302, 0
        %v1837 = vsel %vm633, %v303, 0
        %v1839 = vsel %vm633, %v304, 0
        %v1841 = vsel %vm633, %v305, 0
        %v1843 = vsel %vm633, %v306, 0
        %v1845 = vsel %vm633, %v307, 0
        %v1847 = vsel %vm633, %v308, 0
        %v1849 = vsel %vm633, %v309, 0
        %v1851 = vsel %vm633, %v310, 0
        %v1853 = vsel %vm633, %v311, 0
        %v1855 = vsel %vm633, %v312, 0
        %v1857 = vsel %vm633, %v313, 0
        %v1859 = vsel %vm633, %v314, 0
        %v1862 = vsel %vm749, %v1824, 0
        %1864 = vmatpush.msra.mxu0 0.0
        %1865 = vmatpush.msra.mxu0 0.0
        %1866 = vmatpush.msra.mxu0 0.0
        %1867 = vmatpush.msra.mxu0 0.0
        %1868 = vmatpush.msra.mxu0 0.0
        %1869 = vmatpush.msra.mxu0 0.0
        %1870 = vmatpush.msra.mxu0 0.0
        %1871 = vmatpush.msra.mxu0 0.0
        %1872 = vmatpush.msra.mxu0 0.0
        %1873 = vmatpush.msra.mxu0 0.0
        %1874 = vmatpush.msra.mxu0 0.0
        %1875 = vmatpush.msra.mxu0 0.0
        %1876 = vmatpush.msra.mxu0 0.0
        %1877 = vmatpush.msra.mxu0 0.0
        %1878 = vmatpush.msra.mxu0 0.0
        %1879 = vmatpush.msra.mxu0 %v1862
        %1880 = vmatmul.f32.gmra.mxu0 %v1829
        %v1881 = vpop.f32.mrf.mxu0
        %v1882 = vadd.f32 %v1827, %v1881
        %1883 = vmatmul.f32.gmra.mxu0 %v1831
        %v1884 = vpop.f32.mrf.mxu0
        %v1885 = vadd.f32 %v1827, %v1884
        %1886 = vmatmul.f32.gmra.mxu0 %v1833
        %v1887 = vpop.f32.mrf.mxu0
        %v1888 = vadd.f32 %v1827, %v1887
        %1889 = vmatmul.f32.gmra.mxu0 %v1835
        %v1890 = vpop.f32.mrf.mxu0
        %v1891 = vadd.f32 %v1827, %v1890
        %1892 = vmatmul.f32.gmra.mxu0 %v1837
        %v1893 = vpop.f32.mrf.mxu0
        %v1894 = vadd.f32 %v1827, %v1893
        %1895 = vmatmul.f32.gmra.mxu0 %v1839
        %v1896 = vpop.f32.mrf.mxu0
        %v1897 = vadd.f32 %v1827, %v1896
        %1898 = vmatmul.f32.gmra.mxu0 %v1841
        %v1899 = vpop.f32.mrf.mxu0
        %v1900 = vadd.f32 %v1827, %v1899
        %1901 = vmatmul.f32.gmra.mxu0 %v1843
        %v1902 = vpop.f32.mrf.mxu0
        %v1903 = vadd.f32 %v1827, %v1902
        %1904 = vmatmul.f32.gmra.mxu0 %v1845
        %v1905 = vpop.f32.mrf.mxu0
        %v1906 = vadd.f32 %v1827, %v1905
        %1907 = vmatmul.f32.gmra.mxu0 %v1847
        %v1908 = vpop.f32.mrf.mxu0
        %v1909 = vadd.f32 %v1827, %v1908
        %1910 = vmatmul.f32.gmra.mxu0 %v1849
        %v1911 = vpop.f32.mrf.mxu0
        %v1912 = vadd.f32 %v1827, %v1911
        %1913 = vmatmul.f32.gmra.mxu0 %v1851
        %v1914 = vpop.f32.mrf.mxu0
        %v1915 = vadd.f32 %v1827, %v1914
        %1916 = vmatmul.f32.gmra.mxu0 %v1853
        %v1917 = vpop.f32.mrf.mxu0
        %v1918 = vadd.f32 %v1827, %v1917
        %1919 = vmatmul.f32.gmra.mxu0 %v1855
        %v1920 = vpop.f32.mrf.mxu0
        %v1921 = vadd.f32 %v1827, %v1920
        %1922 = vmatmul.f32.gmra.mxu0 %v1857
        %v1923 = vpop.f32.mrf.mxu0
        %v1924 = vadd.f32 %v1827, %v1923
        %1925 = vmatmul.f32.gmra.mxu0 %v1859
        %v1926 = vpop.f32.mrf.mxu0
        %v1927 = vadd.f32 %v1827, %v1926
        %1928 = vdwg.mxu0
        %v1929 = vadd.f32 %v1808, %v1882
        %v1930 = vadd.f32 %v1809, %v1885
        %v1931 = vadd.f32 %v1810, %v1888
        %v1932 = vadd.f32 %v1811, %v1891
        %v1933 = vadd.f32 %v1812, %v1894
        %v1934 = vadd.f32 %v1813, %v1897
        %v1935 = vadd.f32 %v1814, %v1900
        %v1936 = vadd.f32 %v1815, %v1903
        %v1937 = vadd.f32 %v1816, %v1906
        %v1938 = vadd.f32 %v1817, %v1909
        %v1939 = vadd.f32 %v1818, %v1912
        %v1940 = vadd.f32 %v1819, %v1915
        %v1941 = vadd.f32 %v1820, %v1918
        %v1942 = vadd.f32 %v1821, %v1921
        %v1943 = vadd.f32 %v1822, %v1924
        %v1944 = vadd.f32 %v1823, %v1927
        %v1961 = vrot.slane %v1929, 2
        %v1962 = vrot.slane %v1929, 4
        %v1963 = vrot.slane %v1929, 6
        %v1964 = vrot.slane %v1930, 2
        %v1965 = vrot.slane %v1930, 4
        %v1966 = vrot.slane %v1930, 6
        %v1967 = vrot.slane %v1931, 2
        %v1968 = vrot.slane %v1931, 4
        %v1969 = vrot.slane %v1931, 6
        %v1970 = vrot.slane %v1932, 2
        %v1971 = vrot.slane %v1932, 4
        %v1972 = vrot.slane %v1932, 6
        %v1973 = vrot.slane %v1933, 2
        %v1974 = vrot.slane %v1933, 4
        %v1975 = vrot.slane %v1933, 6
        %v1976 = vrot.slane %v1934, 2
        %v1977 = vrot.slane %v1934, 4
        %v1978 = vrot.slane %v1934, 6
        %v1979 = vrot.slane %v1935, 2
        %v1980 = vrot.slane %v1935, 4
        %v1981 = vrot.slane %v1935, 6
        %v1982 = vrot.slane %v1936, 2
        %v1983 = vrot.slane %v1936, 4
        %v1984 = vrot.slane %v1936, 6
        %v1985 = vrot.slane %v1937, 2
        %v1986 = vrot.slane %v1937, 4
        %v1987 = vrot.slane %v1937, 6
        %v1988 = vrot.slane %v1938, 2
        %v1989 = vrot.slane %v1938, 4
        %v1990 = vrot.slane %v1938, 6
        %v1991 = vrot.slane %v1939, 2
        %v1992 = vrot.slane %v1939, 4
        %v1993 = vrot.slane %v1939, 6
        %v1994 = vrot.slane %v1940, 2
        %v1995 = vrot.slane %v1940, 4
        %v1996 = vrot.slane %v1940, 6
        %v1997 = vrot.slane %v1941, 2
        %v1998 = vrot.slane %v1941, 4
        %v1999 = vrot.slane %v1941, 6
        %v2000 = vrot.slane %v1942, 2
        %v2001 = vrot.slane %v1942, 4
        %v2002 = vrot.slane %v1942, 6
        %v2003 = vrot.slane %v1943, 2
        %v2004 = vrot.slane %v1943, 4
        %v2005 = vrot.slane %v1943, 6
        %v2006 = vrot.slane %v1944, 2
        %v2007 = vrot.slane %v1944, 4
        %v2008 = vrot.slane %v1944, 6
        %v2057 = vrot.slane %v1929, 7
        %v2058 = vrot.slane %v2057, 2
        %v2059 = vrot.slane %v1961, 7
        %v2060 = vrot.slane %v2059, 2
        %v2061 = vrot.slane %v1962, 7
        %v2062 = vrot.slane %v2061, 2
        %v2063 = vrot.slane %v1963, 7
        %v2064 = vrot.slane %v2063, 2
        %v2065 = vrot.slane %v1930, 7
        %v2066 = vrot.slane %v2065, 2
        %v2067 = vrot.slane %v1964, 7
        %v2068 = vrot.slane %v2067, 2
        %v2069 = vrot.slane %v1965, 7
        %v2070 = vrot.slane %v2069, 2
        %v2071 = vrot.slane %v1966, 7
        %v2072 = vrot.slane %v2071, 2
        %v2073 = vrot.slane %v1931, 7
        %v2074 = vrot.slane %v2073, 2
        %v2075 = vrot.slane %v1967, 7
        %v2076 = vrot.slane %v2075, 2
        %v2077 = vrot.slane %v1968, 7
        %v2078 = vrot.slane %v2077, 2
        %v2079 = vrot.slane %v1969, 7
        %v2080 = vrot.slane %v2079, 2
        %v2081 = vrot.slane %v1932, 7
        %v2082 = vrot.slane %v2081, 2
        %v2083 = vrot.slane %v1970, 7
        %v2084 = vrot.slane %v2083, 2
        %v2085 = vrot.slane %v1971, 7
        %v2086 = vrot.slane %v2085, 2
        %v2087 = vrot.slane %v1972, 7
        %v2088 = vrot.slane %v2087, 2
        %v2089 = vrot.slane %v1933, 7
        %v2090 = vrot.slane %v2089, 2
        %v2091 = vrot.slane %v1973, 7
        %v2092 = vrot.slane %v2091, 2
        %v2093 = vrot.slane %v1974, 7
        %v2094 = vrot.slane %v2093, 2
        %v2095 = vrot.slane %v1975, 7
        %v2096 = vrot.slane %v2095, 2
        %v2097 = vrot.slane %v1934, 7
        %v2098 = vrot.slane %v2097, 2
        %v2099 = vrot.slane %v1976, 7
        %v2100 = vrot.slane %v2099, 2
        %v2101 = vrot.slane %v1977, 7
        %v2102 = vrot.slane %v2101, 2
        %v2103 = vrot.slane %v1978, 7
        %v2104 = vrot.slane %v2103, 2
        %v2105 = vrot.slane %v1935, 7
        %v2106 = vrot.slane %v2105, 2
        %v2107 = vrot.slane %v1979, 7
        %v2108 = vrot.slane %v2107, 2
        %v2109 = vrot.slane %v1980, 7
        %v2110 = vrot.slane %v2109, 2
        %v2111 = vrot.slane %v1981, 7
        %v2112 = vrot.slane %v2111, 2
        %v2113 = vrot.slane %v1936, 7
        %v2114 = vrot.slane %v2113, 2
        %v2115 = vrot.slane %v1982, 7
        %v2116 = vrot.slane %v2115, 2
        %v2117 = vrot.slane %v1983, 7
        %v2118 = vrot.slane %v2117, 2
        %v2119 = vrot.slane %v1984, 7
        %v2120 = vrot.slane %v2119, 2
        %v2121 = vrot.slane %v1937, 7
        %v2122 = vrot.slane %v2121, 2
        %v2123 = vrot.slane %v1985, 7
        %v2124 = vrot.slane %v2123, 2
        %v2125 = vrot.slane %v1986, 7
        %v2126 = vrot.slane %v2125, 2
        %v2127 = vrot.slane %v1987, 7
        %v2128 = vrot.slane %v2127, 2
        %v2129 = vrot.slane %v1938, 7
        %v2130 = vrot.slane %v2129, 2
        %v2131 = vrot.slane %v1988, 7
        %v2132 = vrot.slane %v2131, 2
        %v2133 = vrot.slane %v1989, 7
        %v2134 = vrot.slane %v2133, 2
        %v2135 = vrot.slane %v1990, 7
        %v2136 = vrot.slane %v2135, 2
        %v2137 = vrot.slane %v1939, 7
        %v2138 = vrot.slane %v2137, 2
        %v2139 = vrot.slane %v1991, 7
        %v2140 = vrot.slane %v2139, 2
        %v2141 = vrot.slane %v1992, 7
        %v2142 = vrot.slane %v2141, 2
        %v2143 = vrot.slane %v1993, 7
        %v2144 = vrot.slane %v2143, 2
        %v2145 = vrot.slane %v1940, 7
        %v2146 = vrot.slane %v2145, 2
        %v2147 = vrot.slane %v1994, 7
        %v2148 = vrot.slane %v2147, 2
        %v2149 = vrot.slane %v1995, 7
        %v2150 = vrot.slane %v2149, 2
        %v2151 = vrot.slane %v1996, 7
        %v2152 = vrot.slane %v2151, 2
        %v2153 = vrot.slane %v1941, 7
        %v2154 = vrot.slane %v2153, 2
        %v2155 = vrot.slane %v1997, 7
        %v2156 = vrot.slane %v2155, 2
        %v2157 = vrot.slane %v1998, 7
        %v2158 = vrot.slane %v2157, 2
        %v2159 = vrot.slane %v1999, 7
        %v2160 = vrot.slane %v2159, 2
        %v2161 = vrot.slane %v1942, 7
        %v2162 = vrot.slane %v2161, 2
        %v2163 = vrot.slane %v2000, 7
        %v2164 = vrot.slane %v2163, 2
        %v2165 = vrot.slane %v2001, 7
        %v2166 = vrot.slane %v2165, 2
        %v2167 = vrot.slane %v2002, 7
        %v2168 = vrot.slane %v2167, 2
        %v2169 = vrot.slane %v1943, 7
        %v2170 = vrot.slane %v2169, 2
        %v2171 = vrot.slane %v2003, 7
        %v2172 = vrot.slane %v2171, 2
        %v2173 = vrot.slane %v2004, 7
        %v2174 = vrot.slane %v2173, 2
        %v2175 = vrot.slane %v2005, 7
        %v2176 = vrot.slane %v2175, 2
        %v2177 = vrot.slane %v1944, 7
        %v2178 = vrot.slane %v2177, 2
        %v2179 = vrot.slane %v2006, 7
        %v2180 = vrot.slane %v2179, 2
        %v2181 = vrot.slane %v2007, 7
        %v2182 = vrot.slane %v2181, 2
        %v2183 = vrot.slane %v2008, 7
        %v2184 = vrot.slane %v2183, 2
        %v2249 = vadd.f32 %v1929, %v2058
        %v2250 = vadd.f32 %v1961, %v2060
        %v2251 = vadd.f32 %v1962, %v2062
        %v2252 = vadd.f32 %v1963, %v2064
        %v2253 = vadd.f32 %v1930, %v2066
        %v2254 = vadd.f32 %v1964, %v2068
        %v2255 = vadd.f32 %v1965, %v2070
        %v2256 = vadd.f32 %v1966, %v2072
        %v2257 = vadd.f32 %v1931, %v2074
        %v2258 = vadd.f32 %v1967, %v2076
        %v2259 = vadd.f32 %v1968, %v2078
        %v2260 = vadd.f32 %v1969, %v2080
        %v2261 = vadd.f32 %v1932, %v2082
        %v2262 = vadd.f32 %v1970, %v2084
        %v2263 = vadd.f32 %v1971, %v2086
        %v2264 = vadd.f32 %v1972, %v2088
        %v2265 = vadd.f32 %v1933, %v2090
        %v2266 = vadd.f32 %v1973, %v2092
        %v2267 = vadd.f32 %v1974, %v2094
        %v2268 = vadd.f32 %v1975, %v2096
        %v2269 = vadd.f32 %v1934, %v2098
        %v2270 = vadd.f32 %v1976, %v2100
        %v2271 = vadd.f32 %v1977, %v2102
        %v2272 = vadd.f32 %v1978, %v2104
        %v2273 = vadd.f32 %v1935, %v2106
        %v2274 = vadd.f32 %v1979, %v2108
        %v2275 = vadd.f32 %v1980, %v2110
        %v2276 = vadd.f32 %v1981, %v2112
        %v2277 = vadd.f32 %v1936, %v2114
        %v2278 = vadd.f32 %v1982, %v2116
        %v2279 = vadd.f32 %v1983, %v2118
        %v2280 = vadd.f32 %v1984, %v2120
        %v2281 = vadd.f32 %v1937, %v2122
        %v2282 = vadd.f32 %v1985, %v2124
        %v2283 = vadd.f32 %v1986, %v2126
        %v2284 = vadd.f32 %v1987, %v2128
        %v2285 = vadd.f32 %v1938, %v2130
        %v2286 = vadd.f32 %v1988, %v2132
        %v2287 = vadd.f32 %v1989, %v2134
        %v2288 = vadd.f32 %v1990, %v2136
        %v2289 = vadd.f32 %v1939, %v2138
        %v2290 = vadd.f32 %v1991, %v2140
        %v2291 = vadd.f32 %v1992, %v2142
        %v2292 = vadd.f32 %v1993, %v2144
        %v2293 = vadd.f32 %v1940, %v2146
        %v2294 = vadd.f32 %v1994, %v2148
        %v2295 = vadd.f32 %v1995, %v2150
        %v2296 = vadd.f32 %v1996, %v2152
        %v2297 = vadd.f32 %v1941, %v2154
        %v2298 = vadd.f32 %v1997, %v2156
        %v2299 = vadd.f32 %v1998, %v2158
        %v2300 = vadd.f32 %v1999, %v2160
        %v2301 = vadd.f32 %v1942, %v2162
        %v2302 = vadd.f32 %v2000, %v2164
        %v2303 = vadd.f32 %v2001, %v2166
        %v2304 = vadd.f32 %v2002, %v2168
        %v2305 = vadd.f32 %v1943, %v2170
        %v2306 = vadd.f32 %v2003, %v2172
        %v2307 = vadd.f32 %v2004, %v2174
        %v2308 = vadd.f32 %v2005, %v2176
        %v2309 = vadd.f32 %v1944, %v2178
        %v2310 = vadd.f32 %v2006, %v2180
        %v2311 = vadd.f32 %v2007, %v2182
        %v2312 = vadd.f32 %v2008, %v2184
        %v2313 = vadd.f32 %v2249, %v2257
        %v2314 = vadd.f32 %v2250, %v2258
        %v2315 = vadd.f32 %v2251, %v2259
        %v2316 = vadd.f32 %v2252, %v2260
        %v2317 = vadd.f32 %v2253, %v2261
        %v2318 = vadd.f32 %v2254, %v2262
        %v2319 = vadd.f32 %v2255, %v2263
        %v2320 = vadd.f32 %v2256, %v2264
        %v2321 = vadd.f32 %v2265, %v2273
        %v2322 = vadd.f32 %v2266, %v2274
        %v2323 = vadd.f32 %v2267, %v2275
        %v2324 = vadd.f32 %v2268, %v2276
        %v2325 = vadd.f32 %v2269, %v2277
        %v2326 = vadd.f32 %v2270, %v2278
        %v2327 = vadd.f32 %v2271, %v2279
        %v2328 = vadd.f32 %v2272, %v2280
        %v2329 = vadd.f32 %v2281, %v2289
        %v2330 = vadd.f32 %v2282, %v2290
        %v2331 = vadd.f32 %v2283, %v2291
        %v2332 = vadd.f32 %v2284, %v2292
        %v2333 = vadd.f32 %v2285, %v2293
        %v2334 = vadd.f32 %v2286, %v2294
        %v2335 = vadd.f32 %v2287, %v2295
        %v2336 = vadd.f32 %v2288, %v2296
        %v2337 = vadd.f32 %v2297, %v2305
        %v2338 = vadd.f32 %v2298, %v2306
        %v2339 = vadd.f32 %v2299, %v2307
        %v2340 = vadd.f32 %v2300, %v2308
        %v2341 = vadd.f32 %v2301, %v2309
        %v2342 = vadd.f32 %v2302, %v2310
        %v2343 = vadd.f32 %v2303, %v2311
        %v2344 = vadd.f32 %v2304, %v2312
        %v2345 = vmul.f32 %v2313, 0.25
        %v2346 = vmul.f32 %v2314, 0.25
        %v2347 = vmul.f32 %v2315, 0.25
        %v2348 = vmul.f32 %v2316, 0.25
        %v2349 = vmul.f32 %v2317, 0.25
        %v2350 = vmul.f32 %v2318, 0.25
        %v2351 = vmul.f32 %v2319, 0.25
        %v2352 = vmul.f32 %v2320, 0.25
        %v2353 = vmul.f32 %v2321, 0.25
        %v2354 = vmul.f32 %v2322, 0.25
        %v2355 = vmul.f32 %v2323, 0.25
        %v2356 = vmul.f32 %v2324, 0.25
        %v2357 = vmul.f32 %v2325, 0.25
        %v2358 = vmul.f32 %v2326, 0.25
        %v2359 = vmul.f32 %v2327, 0.25
        %v2360 = vmul.f32 %v2328, 0.25
        %v2361 = vmul.f32 %v2329, 0.25
        %v2362 = vmul.f32 %v2330, 0.25
        %v2363 = vmul.f32 %v2331, 0.25
        %v2364 = vmul.f32 %v2332, 0.25
        %v2365 = vmul.f32 %v2333, 0.25
        %v2366 = vmul.f32 %v2334, 0.25
        %v2367 = vmul.f32 %v2335, 0.25
        %v2368 = vmul.f32 %v2336, 0.25
        %v2369 = vmul.f32 %v2337, 0.25
        %v2370 = vmul.f32 %v2338, 0.25
        %v2371 = vmul.f32 %v2339, 0.25
        %v2372 = vmul.f32 %v2340, 0.25
        %v2373 = vmul.f32 %v2341, 0.25
        %v2374 = vmul.f32 %v2342, 0.25
        %v2375 = vmul.f32 %v2343, 0.25
        %v2376 = vmul.f32 %v2344, 0.25
        %v2409 = vperm.slane %v2345, 0
        %v2410 = vperm.slane %v2346, 0
        %v2411 = vperm.slane %v2347, 0
        %v2412 = vperm.slane %v2348, 0
        %v2413 = vperm.slane %v2349, 0
        %v2414 = vperm.slane %v2350, 0
        %v2415 = vperm.slane %v2351, 0
        %v2416 = vperm.slane %v2352, 0
        %v2417 = vperm.slane %v2353, 0
        %v2418 = vperm.slane %v2354, 0
        %v2419 = vperm.slane %v2355, 0
        %v2420 = vperm.slane %v2356, 0
        %v2421 = vperm.slane %v2357, 0
        %v2422 = vperm.slane %v2358, 0
        %v2423 = vperm.slane %v2359, 0
        %v2424 = vperm.slane %v2360, 0
        %v2425 = vperm.slane %v2361, 0
        %v2426 = vperm.slane %v2362, 0
        %v2427 = vperm.slane %v2363, 0
        %v2428 = vperm.slane %v2364, 0
        %v2429 = vperm.slane %v2365, 0
        %v2430 = vperm.slane %v2366, 0
        %v2431 = vperm.slane %v2367, 0
        %v2432 = vperm.slane %v2368, 0
        %v2433 = vperm.slane %v2369, 0
        %v2434 = vperm.slane %v2370, 0
        %v2435 = vperm.slane %v2371, 0
        %v2436 = vperm.slane %v2372, 0
        %v2437 = vperm.slane %v2373, 0
        %v2438 = vperm.slane %v2374, 0
        %v2439 = vperm.slane %v2375, 0
        %v2440 = vperm.slane %v2376, 0
        %vm2441 = vcmask 1041409
        %v2442 = vsel %vm2441, %v2410, %v2409
        %vm2443 = vcmask 1042434
        %v2444 = vsel %vm2443, %v2411, %v2442
        %vm2445 = vcmask 1043459
        %v2446 = vsel %vm2445, %v2412, %v2444
        %vm2447 = vcmask 1044484
        %v2448 = vsel %vm2447, %v2413, %v2446
        %vm2449 = vcmask 1045509
        %v2450 = vsel %vm2449, %v2414, %v2448
        %vm2451 = vcmask 1046534
        %v2452 = vsel %vm2451, %v2415, %v2450
        %vm2453 = vcmask 1047559
        %v2454 = vsel %vm2453, %v2416, %v2452
        %v2455 = vsel %vm2441, %v2418, %v2417
        %v2456 = vsel %vm2443, %v2419, %v2455
        %v2457 = vsel %vm2445, %v2420, %v2456
        %v2458 = vsel %vm2447, %v2421, %v2457
        %v2459 = vsel %vm2449, %v2422, %v2458
        %v2460 = vsel %vm2451, %v2423, %v2459
        %v2461 = vsel %vm2453, %v2424, %v2460
        %v2462 = vsel %vm2441, %v2426, %v2425
        %v2463 = vsel %vm2443, %v2427, %v2462
        %v2464 = vsel %vm2445, %v2428, %v2463
        %v2465 = vsel %vm2447, %v2429, %v2464
        %v2466 = vsel %vm2449, %v2430, %v2465
        %v2467 = vsel %vm2451, %v2431, %v2466
        %v2468 = vsel %vm2453, %v2432, %v2467
        %v2469 = vsel %vm2441, %v2434, %v2433
        %v2470 = vsel %vm2443, %v2435, %v2469
        %v2471 = vsel %vm2445, %v2436, %v2470
        %v2472 = vsel %vm2447, %v2437, %v2471
        %v2473 = vsel %vm2449, %v2438, %v2472
        %v2474 = vsel %vm2451, %v2439, %v2473
        %v2475 = vsel %vm2453, %v2440, %v2474
        %2480 = vst.msk [vmem:[%s285] sm:$0xff] %vm658, %v2454
        %2481 = vst.msk [vmem:[%s285 + $0x8] sm:$0xff] %vm658, %v2461
        %2482 = vst.msk [vmem:[%s285 + $0x10] sm:$0xff] %vm658, %v2468
        %2483 = vst.msk [vmem:[%s285 + $0x18] sm:$0xff] %vm658, %v2475
        %s2484 = sand.u32 %s195, 1
        %s2485 = scalar_lea.sflag [#allocation3], %s2484
        %s2486 = sand.u32 %s195, 1
        %s2487 = smul.addr %s2486, 32
        %s2488 = scalar_lea.vmem [#allocation2], %s2487
        // Predicated region
        $region49: #{tpu_custom_call.1} parent=47 // pred_check
          %p2489 = pneg %p205
        $region50: #{tpu_custom_call.1} parent=47 // pred_check_branch
          %2491 = sbr.rel (%p2489) target = $region52
        $region51: #{tpu_custom_call.1} parent=47 // pred_region
          %s2492 = smul.u32 4, %s26
          %2494 = vsyncadd %s2485, 0
          %s2495 = smul.addr %s25, 8
          %s2496 = sadd.s32 %s2492, %s2495
          %s2497 = smul.addr %s2496, 8
          %s2498 = scalar_lea.hbm %s7, %s2497
          %s2499 = sshll.u32 %s2488, 4
          %s2500 = int_to_ptr.vmem [resolvable:$true] %s2499
          %s2501 = sshll.u32 %s2498, 4
          %s2502 = int_to_ptr.hbm [resolvable:$true] %s2501
          %2507 = dma.vmem_to_hbm [thread:$0]  %s2500, 512, %s2502, %s2485, 128, 128, 8
        $region52: #{tpu_custom_call.1} parent=47 // pred_fallthru
          _
      $region48: #{tpu_custom_call.1} parent=5 // pred_fallthru
        _
      %p2508 = scmp.le.s32.totalorder 2, %s16
      // Predicated region
      $region53: #{tpu_custom_call.1} parent=5 // pred_check
        %p2509 = pneg %p2508
      $region54: #{tpu_custom_call.1} parent=5 // pred_check_branch
        %2511 = sbr.rel (%p2509) target = $region56
      $region55: #{tpu_custom_call.1} parent=5 // pred_region
        %s2512 = ssub.s32 %s16, 2
        // Predicated region
        $region57: #{tpu_custom_call.1} parent=55 // pred_check
          %p2513 = pneg %p211
        $region58: #{tpu_custom_call.1} parent=55 // pred_check_branch
          %2515 = sbr.rel (%p2513) target = $region60
        $region59: #{tpu_custom_call.1} parent=55 // pred_region
          %s2516 = sand.u32 %s196, 1
          %s2517 = scalar_lea.sflag [#allocation3], %s2516
          %s2518 = sand.u32 %s196, 1
          %s2519 = smul.addr %s2518, 32
          %s2520 = scalar_lea.vmem [#allocation2], %s2519
          %2522 = dma.done %s2517, 512
        $region60: #{tpu_custom_call.1} parent=55 // pred_fallthru
          _
      $region56: #{tpu_custom_call.1} parent=5 // pred_fallthru
        _
    $region6: #{tpu_custom_call.1} parent=1 // loop_footer
      %s20 = sadd.s32 1, %s16
    $region7: #{tpu_custom_call.1} parent=1 // loop_footer_branch
      %15 = sbr.rel target = $region3
    $region8: #{tpu_custom_call.1} parent=1 // loop_exit
      _
    %2523 = vsyncpa [#allocation3], 1
    %s2524 = scalar_lea.sflag [#allocation3], 1
    %2525 = vsyncpa %s2524, 1

</llo_original>
